<compile_context>
chip_gen: v6e
topology: v6e:2x2x1
jax: 0.10.0
libtpu: 0.0.40
codegen_flags: <defaults>
</compile_context>

<pallas_src>
import jax
import jax.numpy as jnp
from jax import lax
from jax.experimental import pallas as pl
from jax.experimental.pallas import tpu as pltpu

N, CIN, CMID, COUT = 2, 4, 8, 8
H = W = 16
EPS = 1e-5  # nn.GroupNorm default


def resblock_kernel(xp_ref, m1_ref, g1_ref, b1_ref, m2_ref, g2_ref, b2_ref,
                    mr_ref, br_ref, out_ref, pad_ref):
    xp = xp_ref[0]                                    # (H+2, W*CIN) row-padded input

    # ---- conv1: 3x3, padding=1, bias=False ----
    # dx taps + W-padding are folded into the banded block weights m1_ref[dy].
    acc1 = jnp.dot(xp[0:H, :], m1_ref[0], preferred_element_type=jnp.float32)
    acc1 = acc1 + jnp.dot(xp[1:H + 1, :], m1_ref[1], preferred_element_type=jnp.float32)
    acc1 = acc1 + jnp.dot(xp[2:H + 2, :], m1_ref[2], preferred_element_type=jnp.float32)

    # ---- GroupNorm(num_groups=1, CMID) + ReLU (single-pass stats) ----
    n1 = float(H * W * CMID)
    s1 = jnp.sum(acc1)
    q1 = jnp.sum(acc1 * acc1)
    mu1 = s1 / n1
    var1 = q1 / n1 - mu1 * mu1
    h1 = (acc1 - mu1) * lax.rsqrt(var1 + EPS)
    h1 = jnp.maximum(h1 * g1_ref[...] + b1_ref[...], 0.0)        # (H, W*CMID)

    # ---- row-padded intermediate for conv2 (only border rows re-zeroed) ----
    zrow = jnp.zeros((1, W * CMID), jnp.float32)
    pad_ref[0:1, :] = zrow
    pad_ref[H + 1:H + 2, :] = zrow
    pad_ref[1:H + 1, :] = h1
    hp = pad_ref[...]                                            # (H+2, W*CMID)

    # ---- conv2: 3x3, padding=1, bias=False ----
    acc2 = jnp.dot(hp[0:H, :], m2_ref[0], preferred_element_type=jnp.float32)
    acc2 = acc2 + jnp.dot(hp[1:H + 1, :], m2_ref[1], preferred_element_type=jnp.float32)
    acc2 = acc2 + jnp.dot(hp[2:H + 2, :], m2_ref[2], preferred_element_type=jnp.float32)

    # ---- GroupNorm(num_groups=1, COUT) + ReLU ----
    n2 = float(H * W * COUT)
    s2 = jnp.sum(acc2)
    q2 = jnp.sum(acc2 * acc2)
    mu2 = s2 / n2
    var2 = q2 / n2 - mu2 * mu2
    h2 = (acc2 - mu2) * lax.rsqrt(var2 + EPS)
    h2 = jnp.maximum(h2 * g2_ref[...] + b2_ref[...], 0.0)        # (H, W*COUT)

    # ---- residual 1x1 conv with bias (rows 1..H of xp are the original x) ----
    res = jnp.dot(xp[1:H + 1, :], mr_ref[...],
                  preferred_element_type=jnp.float32) + br_ref[...]

    out_ref[0] = h2 + res                                        # (16, 128) lane-dense store


@jax.jit
def resblock_forward(x_nchw, params, t=None):
    # add_time=False, so `t` is unused.
    # TODO(synk): `pos_encoding()` is not defined in the reference source, so the
    # add_time / time_projector branch is not implemented.
    x_nhwc = jnp.transpose(x_nchw, (0, 2, 3, 1)).astype(jnp.float32)   # (N,H,W,CIN)
    x_rows = x_nhwc.reshape(N, H, W * CIN)                             # (N,16,64)
    xpad = jnp.pad(x_rows, ((0, 0), (1, 1), (0, 0)))                   # (N,18,64)

    # Banded block weights: fold kx taps and W-direction zero padding into K.
    kx = jnp.arange(3).reshape(3, 1, 1)
    w_in = jnp.arange(W).reshape(1, W, 1)
    w_out = jnp.arange(W).reshape(1, 1, W)
    sel = (w_in - w_out + 1 == kx).astype(jnp.float32)                 # (3, W, W)

    w1_r = jnp.transpose(params["w1"], (2, 3, 1, 0))                   # (ky,kx,CIN,CMID)
    w2_r = jnp.transpose(params["w2"], (2, 3, 1, 0))                   # (ky,kx,CMID,COUT)
    m1 = jnp.einsum("kab,dkio->daibo", sel, w1_r).reshape(3, W * CIN, W * CMID)
    m2 = jnp.einsum("kab,dkio->daibo", sel, w2_r).reshape(3, W * CMID, W * COUT)
    wr = params["wr"][:, :, 0, 0].T                                    # (CIN, COUT)
    mr = jnp.einsum("ab,io->aibo", jnp.eye(W, dtype=jnp.float32),
                    wr).reshape(W * CIN, W * COUT)                     # block-diagonal

    g1 = jnp.tile(params["g1"], W).reshape(1, W * CMID)
    b1 = jnp.tile(params["b1"], W).reshape(1, W * CMID)
    g2 = jnp.tile(params["g2"], W).reshape(1, W * COUT)
    b2 = jnp.tile(params["b2"], W).reshape(1, W * COUT)
    br = jnp.tile(params["br"], W).reshape(1, W * COUT)

    def full(shape):
        return pl.BlockSpec(shape, lambda n, _r=len(shape): (0,) * _r)

    out = pl.pallas_call(
        resblock_kernel,
        out_shape=jax.ShapeDtypeStruct((N, H, W * COUT), jnp.float32),
        grid=(N,),
        in_specs=[
            pl.BlockSpec((1, H + 2, W * CIN), lambda n: (n, 0, 0)),
            full((3, W * CIN, W * CMID)),
            full((1, W * CMID)), full((1, W * CMID)),
            full((3, W * CMID, W * COUT)),
            full((1, W * COUT)), full((1, W * COUT)),
            full((W * CIN, W * COUT)),
            full((1, W * COUT)),
        ],
        out_specs=pl.BlockSpec((1, H, W * COUT), lambda n: (n, 0, 0)),
        scratch_shapes=[pltpu.VMEM((H + 2, W * CMID), jnp.float32)],
        compiler_params=pltpu.CompilerParams(dimension_semantics=("parallel",)),
    )(xpad, m1, g1, b1, m2, g2, b2, mr, br)

    out_nhwc = out.reshape(N, H, W, COUT)
    return jnp.transpose(out_nhwc, (0, 3, 1, 2))                       # back to NCHW


def ref_forward(x, params):
    """Pure-JAX reference mirroring the PyTorch module (NCHW)."""
    def conv(inp, w, pad):
        return lax.conv_general_dilated(
            inp, w, (1, 1), [(pad, pad), (pad, pad)],
            dimension_numbers=("NCHW", "OIHW", "NCHW"))

    def gn(h, g, b):
        m = h.mean(axis=(1, 2, 3), keepdims=True)
        v = ((h - m) ** 2).mean(axis=(1, 2, 3), keepdims=True)
        return (h - m) / jnp.sqrt(v + EPS) * g[None, :, None, None] + b[None, :, None, None]

    h = jnp.maximum(gn(conv(x, params["w1"], 1), params["g1"], params["b1"]), 0.0)
    h = jnp.maximum(gn(conv(h, params["w2"], 1), params["g2"], params["b2"]), 0.0)
    r = conv(x, params["wr"], 0) + params["br"][None, :, None, None]
    return h + r


if __name__ == "__main__":
    key = jax.random.PRNGKey(0)
    ks = jax.random.split(key, 9)
    params = {
        "w1": jax.random.normal(ks[0], (CMID, CIN, 3, 3), jnp.float32) * 0.2,
        "g1": 1.0 + 0.1 * jax.random.normal(ks[1], (CMID,), jnp.float32),
        "b1": 0.1 * jax.random.normal(ks[2], (CMID,), jnp.float32),
        "w2": jax.random.normal(ks[3], (COUT, CMID, 3, 3), jnp.float32) * 0.2,
        "g2": 1.0 + 0.1 * jax.random.normal(ks[4], (COUT,), jnp.float32),
        "b2": 0.1 * jax.random.normal(ks[5], (COUT,), jnp.float32),
        "wr": jax.random.normal(ks[6], (COUT, CIN, 1, 1), jnp.float32) * 0.2,
        "br": 0.1 * jax.random.normal(ks[7], (COUT,), jnp.float32),
    }
    x = jax.random.normal(ks[8], (N, CIN, H, W), jnp.float32)
    t = jnp.zeros((N,), jnp.float32)  # unused (add_time=False)

    out = jax.block_until_ready(resblock_forward(x, params, t))
    ref = jax.block_until_ready(ref_forward(x, params))

    assert out.shape == (N, COUT, H, W)
    assert jnp.allclose(out, ref, atol=1e-4, rtol=1e-4), float(jnp.abs(out - ref).max())
    print("KERNEL_OK")
</pallas_src>

<mosaic_0001>
module attributes {stable_mosaic.version = 11 : i64} {
  func.func @resblock_kernel(%arg0: i32, %arg1: memref<1x18x64xf32, #tpu.memory_space<vmem>>, %arg2: memref<3x64x128xf32, #tpu.memory_space<vmem>>, %arg3: memref<1x128xf32, #tpu.memory_space<vmem>>, %arg4: memref<1x128xf32, #tpu.memory_space<vmem>>, %arg5: memref<3x128x128xf32, #tpu.memory_space<vmem>>, %arg6: memref<1x128xf32, #tpu.memory_space<vmem>>, %arg7: memref<1x128xf32, #tpu.memory_space<vmem>>, %arg8: memref<64x128xf32, #tpu.memory_space<vmem>>, %arg9: memref<1x128xf32, #tpu.memory_space<vmem>>, %arg10: memref<1x16x128xf32, #tpu.memory_space<vmem>>, %arg11: memref<18x128xf32, #tpu.memory_space<vmem>>) attributes {dimension_semantics = [#tpu.dimension_semantics<parallel>], iteration_bounds = array<i64: 2>, scalar_prefetch = 0 : i64, scratch_operands = 1 : i64, tpu.core_type = #tpu.core_type<tc>, window_params = [{transform_indices = @transform_0, window_bounds = array<i64: 1, 18, 64>}, {pipeline_mode = #tpu.pipeline_mode<synchronous>, transform_indices = @transform_1, window_bounds = array<i64: 3, 64, 128>}, {pipeline_mode = #tpu.pipeline_mode<synchronous>, transform_indices = @transform_2, window_bounds = array<i64: 1, 128>}, {pipeline_mode = #tpu.pipeline_mode<synchronous>, transform_indices = @transform_3, window_bounds = array<i64: 1, 128>}, {pipeline_mode = #tpu.pipeline_mode<synchronous>, transform_indices = @transform_4, window_bounds = array<i64: 3, 128, 128>}, {pipeline_mode = #tpu.pipeline_mode<synchronous>, transform_indices = @transform_5, window_bounds = array<i64: 1, 128>}, {pipeline_mode = #tpu.pipeline_mode<synchronous>, transform_indices = @transform_6, window_bounds = array<i64: 1, 128>}, {pipeline_mode = #tpu.pipeline_mode<synchronous>, transform_indices = @transform_7, window_bounds = array<i64: 64, 128>}, {pipeline_mode = #tpu.pipeline_mode<synchronous>, transform_indices = @transform_8, window_bounds = array<i64: 1, 128>}, {transform_indices = @transform_9, window_bounds = array<i64: 1, 16, 128>}]} {
    %c0 = arith.constant 0 : index
    %c0_0 = arith.constant 0 : index
    %c0_1 = arith.constant 0 : index
    %0 = vector.load %arg1[%c0, %c0_0, %c0_1] : memref<1x18x64xf32, #tpu.memory_space<vmem>>, vector<1x18x64xf32>
    %1 = vector.shape_cast %0 : vector<1x18x64xf32> to vector<18x64xf32>
    %2 = vector.extract_strided_slice %1 {offsets = [0, 0], sizes = [16, 64], strides = [1, 1]} : vector<18x64xf32> to vector<16x64xf32>
    %c0_2 = arith.constant 0 : index
    %c0_3 = arith.constant 0 : index
    %c0_4 = arith.constant 0 : index
    %3 = vector.load %arg2[%c0_2, %c0_3, %c0_4] : memref<3x64x128xf32, #tpu.memory_space<vmem>>, vector<1x64x128xf32>
    %4 = vector.shape_cast %3 : vector<1x64x128xf32> to vector<64x128xf32>
    %cst = arith.constant dense<0.000000e+00> : vector<16x128xf32>
    %5 = tpu.matmul %2, %4, %cst {dimension_numbers = #tpu.dot_dimension_numbers<[1], [0], [0], [1], [0, 0, 1, 1], [], []>} : vector<16x64xf32>, vector<64x128xf32>, vector<16x128xf32> -> vector<16x128xf32>
    %6 = vector.extract_strided_slice %1 {offsets = [1, 0], sizes = [16, 64], strides = [1, 1]} : vector<18x64xf32> to vector<16x64xf32>
    %c1 = arith.constant 1 : index
    %c0_5 = arith.constant 0 : index
    %c0_6 = arith.constant 0 : index
    %7 = vector.load %arg2[%c1, %c0_5, %c0_6] : memref<3x64x128xf32, #tpu.memory_space<vmem>>, vector<1x64x128xf32>
    %8 = vector.shape_cast %7 : vector<1x64x128xf32> to vector<64x128xf32>
    %cst_7 = arith.constant dense<0.000000e+00> : vector<16x128xf32>
    %9 = tpu.matmul %6, %8, %cst_7 {dimension_numbers = #tpu.dot_dimension_numbers<[1], [0], [0], [1], [0, 0, 1, 1], [], []>} : vector<16x64xf32>, vector<64x128xf32>, vector<16x128xf32> -> vector<16x128xf32>
    %10 = arith.addf %5, %9 : vector<16x128xf32>
    %11 = vector.extract_strided_slice %1 {offsets = [2, 0], sizes = [16, 64], strides = [1, 1]} : vector<18x64xf32> to vector<16x64xf32>
    %c2 = arith.constant 2 : index
    %c0_8 = arith.constant 0 : index
    %c0_9 = arith.constant 0 : index
    %12 = vector.load %arg2[%c2, %c0_8, %c0_9] : memref<3x64x128xf32, #tpu.memory_space<vmem>>, vector<1x64x128xf32>
    %13 = vector.shape_cast %12 : vector<1x64x128xf32> to vector<64x128xf32>
    %cst_10 = arith.constant dense<0.000000e+00> : vector<16x128xf32>
    %14 = tpu.matmul %11, %13, %cst_10 {dimension_numbers = #tpu.dot_dimension_numbers<[1], [0], [0], [1], [0, 0, 1, 1], [], []>} : vector<16x64xf32>, vector<64x128xf32>, vector<16x128xf32> -> vector<16x128xf32>
    %15 = arith.addf %10, %14 : vector<16x128xf32>
    %16 = vector.shape_cast %15 : vector<16x128xf32> to vector<1x16x128xf32>
    %cst_11 = arith.constant dense<0.000000e+00> : vector<1xf32>
    %17 = vector.multi_reduction <add>, %16, %cst_11 [1, 2] : vector<1x16x128xf32> to vector<1xf32>
    %18 = vector.shape_cast %17 : vector<1xf32> to vector<1x1x1xf32>
    %19 = vector.extract %18[0, 0, 0] : f32 from vector<1x1x1xf32>
    %20 = arith.mulf %15, %15 : vector<16x128xf32>
    %21 = vector.shape_cast %20 : vector<16x128xf32> to vector<1x16x128xf32>
    %cst_12 = arith.constant dense<0.000000e+00> : vector<1xf32>
    %22 = vector.multi_reduction <add>, %21, %cst_12 [1, 2] : vector<1x16x128xf32> to vector<1xf32>
    %23 = vector.shape_cast %22 : vector<1xf32> to vector<1x1x1xf32>
    %24 = vector.extract %23[0, 0, 0] : f32 from vector<1x1x1xf32>
    %cst_13 = arith.constant 2.048000e+03 : f32
    %25 = arith.divf %19, %cst_13 : f32
    %cst_14 = arith.constant 2.048000e+03 : f32
    %26 = arith.divf %24, %cst_14 : f32
    %27 = arith.mulf %25, %25 : f32
    %28 = arith.subf %26, %27 : f32
    %29 = vector.broadcast %25 : f32 to vector<16x128xf32>
    %30 = arith.subf %15, %29 : vector<16x128xf32>
    %cst_15 = arith.constant 9.99999974E-6 : f32
    %31 = arith.addf %28, %cst_15 : f32
    %32 = math.rsqrt %31 : f32
    %33 = vector.broadcast %32 : f32 to vector<16x128xf32>
    %34 = arith.mulf %30, %33 : vector<16x128xf32>
    %c0_16 = arith.constant 0 : index
    %c0_17 = arith.constant 0 : index
    %35 = vector.load %arg3[%c0_16, %c0_17] : memref<1x128xf32, #tpu.memory_space<vmem>>, vector<1x128xf32>
    %36 = vector.broadcast %35 : vector<1x128xf32> to vector<16x128xf32>
    %37 = arith.mulf %34, %36 : vector<16x128xf32>
    %c0_18 = arith.constant 0 : index
    %c0_19 = arith.constant 0 : index
    %38 = vector.load %arg4[%c0_18, %c0_19] : memref<1x128xf32, #tpu.memory_space<vmem>>, vector<1x128xf32>
    %39 = vector.broadcast %38 : vector<1x128xf32> to vector<16x128xf32>
    %40 = arith.addf %37, %39 : vector<16x128xf32>
    %cst_20 = arith.constant 0.000000e+00 : f32
    %41 = vector.broadcast %cst_20 : f32 to vector<16x128xf32>
    %42 = arith.maximumf %40, %41 : vector<16x128xf32>
    %cst_21 = arith.constant 0.000000e+00 : f32
    %43 = vector.broadcast %cst_21 : f32 to vector<1x128xf32>
    %c0_22 = arith.constant 0 : index
    %c0_23 = arith.constant 0 : index
    %44 = vector.load %arg11[%c0_22, %c0_23] : memref<18x128xf32, #tpu.memory_space<vmem>>, vector<1x128xf32>
    tpu.vector_store %arg11[%c0_22, %c0_23], %43 {strides = array<i32>} : memref<18x128xf32, #tpu.memory_space<vmem>>, vector<1x128xf32>,
    %c17 = arith.constant 17 : index
    %c0_24 = arith.constant 0 : index
    %45 = vector.load %arg11[%c17, %c0_24] : memref<18x128xf32, #tpu.memory_space<vmem>>, vector<1x128xf32>
    tpu.vector_store %arg11[%c17, %c0_24], %43 {strides = array<i32>} : memref<18x128xf32, #tpu.memory_space<vmem>>, vector<1x128xf32>,
    %c1_25 = arith.constant 1 : index
    %c0_26 = arith.constant 0 : index
    %46 = vector.load %arg11[%c1_25, %c0_26] : memref<18x128xf32, #tpu.memory_space<vmem>>, vector<16x128xf32>
    tpu.vector_store %arg11[%c1_25, %c0_26], %42 {strides = array<i32>} : memref<18x128xf32, #tpu.memory_space<vmem>>, vector<16x128xf32>,
    %c0_27 = arith.constant 0 : index
    %c0_28 = arith.constant 0 : index
    %47 = vector.load %arg11[%c0_27, %c0_28] : memref<18x128xf32, #tpu.memory_space<vmem>>, vector<18x128xf32>
    %48 = vector.extract_strided_slice %47 {offsets = [0, 0], sizes = [16, 128], strides = [1, 1]} : vector<18x128xf32> to vector<16x128xf32>
    %c0_29 = arith.constant 0 : index
    %c0_30 = arith.constant 0 : index
    %c0_31 = arith.constant 0 : index
    %49 = vector.load %arg5[%c0_29, %c0_30, %c0_31] : memref<3x128x128xf32, #tpu.memory_space<vmem>>, vector<1x128x128xf32>
    %50 = vector.shape_cast %49 : vector<1x128x128xf32> to vector<128x128xf32>
    %cst_32 = arith.constant dense<0.000000e+00> : vector<16x128xf32>
    %51 = tpu.matmul %48, %50, %cst_32 {dimension_numbers = #tpu.dot_dimension_numbers<[1], [0], [0], [1], [0, 0, 1, 1], [], []>} : vector<16x128xf32>, vector<128x128xf32>, vector<16x128xf32> -> vector<16x128xf32>
    %52 = vector.extract_strided_slice %47 {offsets = [1, 0], sizes = [16, 128], strides = [1, 1]} : vector<18x128xf32> to vector<16x128xf32>
    %c1_33 = arith.constant 1 : index
    %c0_34 = arith.constant 0 : index
    %c0_35 = arith.constant 0 : index
    %53 = vector.load %arg5[%c1_33, %c0_34, %c0_35] : memref<3x128x128xf32, #tpu.memory_space<vmem>>, vector<1x128x128xf32>
    %54 = vector.shape_cast %53 : vector<1x128x128xf32> to vector<128x128xf32>
    %cst_36 = arith.constant dense<0.000000e+00> : vector<16x128xf32>
    %55 = tpu.matmul %52, %54, %cst_36 {dimension_numbers = #tpu.dot_dimension_numbers<[1], [0], [0], [1], [0, 0, 1, 1], [], []>} : vector<16x128xf32>, vector<128x128xf32>, vector<16x128xf32> -> vector<16x128xf32>
    %56 = arith.addf %51, %55 : vector<16x128xf32>
    %57 = vector.extract_strided_slice %47 {offsets = [2, 0], sizes = [16, 128], strides = [1, 1]} : vector<18x128xf32> to vector<16x128xf32>
    %c2_37 = arith.constant 2 : index
    %c0_38 = arith.constant 0 : index
    %c0_39 = arith.constant 0 : index
    %58 = vector.load %arg5[%c2_37, %c0_38, %c0_39] : memref<3x128x128xf32, #tpu.memory_space<vmem>>, vector<1x128x128xf32>
    %59 = vector.shape_cast %58 : vector<1x128x128xf32> to vector<128x128xf32>
    %cst_40 = arith.constant dense<0.000000e+00> : vector<16x128xf32>
    %60 = tpu.matmul %57, %59, %cst_40 {dimension_numbers = #tpu.dot_dimension_numbers<[1], [0], [0], [1], [0, 0, 1, 1], [], []>} : vector<16x128xf32>, vector<128x128xf32>, vector<16x128xf32> -> vector<16x128xf32>
    %61 = arith.addf %56, %60 : vector<16x128xf32>
    %62 = vector.shape_cast %61 : vector<16x128xf32> to vector<1x16x128xf32>
    %cst_41 = arith.constant dense<0.000000e+00> : vector<1xf32>
    %63 = vector.multi_reduction <add>, %62, %cst_41 [1, 2] : vector<1x16x128xf32> to vector<1xf32>
    %64 = vector.shape_cast %63 : vector<1xf32> to vector<1x1x1xf32>
    %65 = vector.extract %64[0, 0, 0] : f32 from vector<1x1x1xf32>
    %66 = arith.mulf %61, %61 : vector<16x128xf32>
    %67 = vector.shape_cast %66 : vector<16x128xf32> to vector<1x16x128xf32>
    %cst_42 = arith.constant dense<0.000000e+00> : vector<1xf32>
    %68 = vector.multi_reduction <add>, %67, %cst_42 [1, 2] : vector<1x16x128xf32> to vector<1xf32>
    %69 = vector.shape_cast %68 : vector<1xf32> to vector<1x1x1xf32>
    %70 = vector.extract %69[0, 0, 0] : f32 from vector<1x1x1xf32>
    %cst_43 = arith.constant 2.048000e+03 : f32
    %71 = arith.divf %65, %cst_43 : f32
    %cst_44 = arith.constant 2.048000e+03 : f32
    %72 = arith.divf %70, %cst_44 : f32
    %73 = arith.mulf %71, %71 : f32
    %74 = arith.subf %72, %73 : f32
    %75 = vector.broadcast %71 : f32 to vector<16x128xf32>
    %76 = arith.subf %61, %75 : vector<16x128xf32>
    %cst_45 = arith.constant 9.99999974E-6 : f32
    %77 = arith.addf %74, %cst_45 : f32
    %78 = math.rsqrt %77 : f32
    %79 = vector.broadcast %78 : f32 to vector<16x128xf32>
    %80 = arith.mulf %76, %79 : vector<16x128xf32>
    %c0_46 = arith.constant 0 : index
    %c0_47 = arith.constant 0 : index
    %81 = vector.load %arg6[%c0_46, %c0_47] : memref<1x128xf32, #tpu.memory_space<vmem>>, vector<1x128xf32>
    %82 = vector.broadcast %81 : vector<1x128xf32> to vector<16x128xf32>
    %83 = arith.mulf %80, %82 : vector<16x128xf32>
    %c0_48 = arith.constant 0 : index
    %c0_49 = arith.constant 0 : index
    %84 = vector.load %arg7[%c0_48, %c0_49] : memref<1x128xf32, #tpu.memory_space<vmem>>, vector<1x128xf32>
    %85 = vector.broadcast %84 : vector<1x128xf32> to vector<16x128xf32>
    %86 = arith.addf %83, %85 : vector<16x128xf32>
    %cst_50 = arith.constant 0.000000e+00 : f32
    %87 = vector.broadcast %cst_50 : f32 to vector<16x128xf32>
    %88 = arith.maximumf %86, %87 : vector<16x128xf32>
    %89 = vector.extract_strided_slice %1 {offsets = [1, 0], sizes = [16, 64], strides = [1, 1]} : vector<18x64xf32> to vector<16x64xf32>
    %c0_51 = arith.constant 0 : index
    %c0_52 = arith.constant 0 : index
    %90 = vector.load %arg8[%c0_51, %c0_52] : memref<64x128xf32, #tpu.memory_space<vmem>>, vector<64x128xf32>
    %cst_53 = arith.constant dense<0.000000e+00> : vector<16x128xf32>
    %91 = tpu.matmul %89, %90, %cst_53 {dimension_numbers = #tpu.dot_dimension_numbers<[1], [0], [0], [1], [0, 0, 1, 1], [], []>} : vector<16x64xf32>, vector<64x128xf32>, vector<16x128xf32> -> vector<16x128xf32>
    %c0_54 = arith.constant 0 : index
    %c0_55 = arith.constant 0 : index
    %92 = vector.load %arg9[%c0_54, %c0_55] : memref<1x128xf32, #tpu.memory_space<vmem>>, vector<1x128xf32>
    %93 = vector.broadcast %92 : vector<1x128xf32> to vector<16x128xf32>
    %94 = arith.addf %91, %93 : vector<16x128xf32>
    %95 = arith.addf %88, %94 : vector<16x128xf32>
    %c0_56 = arith.constant 0 : index
    %c0_57 = arith.constant 0 : index
    %c0_58 = arith.constant 0 : index
    %96 = vector.load %arg10[%c0_56, %c0_57, %c0_58] : memref<1x16x128xf32, #tpu.memory_space<vmem>>, vector<1x16x128xf32>
    %97 = vector.shape_cast %96 : vector<1x16x128xf32> to vector<16x128xf32>
    %98 = vector.shape_cast %95 : vector<16x128xf32> to vector<1x16x128xf32>
    tpu.vector_store %arg10[%c0_56, %c0_57, %c0_58], %98 {strides = array<i32>} : memref<1x16x128xf32, #tpu.memory_space<vmem>>, vector<1x16x128xf32>,
    return
  }
  func.func @transform_0(%arg0: i32) -> (i32, i32, i32) {
    %c0_i32 = arith.constant 0 : i32
    %c0_i32_0 = arith.constant 0 : i32
    %c0_i32_1 = arith.constant 0 : i32
    return %arg0, %c0_i32, %c0_i32_0 : i32, i32, i32
  }
  func.func @transform_1(%arg0: i32) -> (i32, i32, i32) {
    %c0_i32 = arith.constant 0 : i32
    %c0_i32_0 = arith.constant 0 : i32
    %c0_i32_1 = arith.constant 0 : i32
    %c0_i32_2 = arith.constant 0 : i32
    return %c0_i32, %c0_i32_0, %c0_i32_1 : i32, i32, i32
  }
  func.func @transform_2(%arg0: i32) -> (i32, i32) {
    %c0_i32 = arith.constant 0 : i32
    %c0_i32_0 = arith.constant 0 : i32
    %c0_i32_1 = arith.constant 0 : i32
    return %c0_i32, %c0_i32_0 : i32, i32
  }
  func.func @transform_3(%arg0: i32) -> (i32, i32) {
    %c0_i32 = arith.constant 0 : i32
    %c0_i32_0 = arith.constant 0 : i32
    %c0_i32_1 = arith.constant 0 : i32
    return %c0_i32, %c0_i32_0 : i32, i32
  }
  func.func @transform_4(%arg0: i32) -> (i32, i32, i32) {
    %c0_i32 = arith.constant 0 : i32
    %c0_i32_0 = arith.constant 0 : i32
    %c0_i32_1 = arith.constant 0 : i32
    %c0_i32_2 = arith.constant 0 : i32
    return %c0_i32, %c0_i32_0, %c0_i32_1 : i32, i32, i32
  }
  func.func @transform_5(%arg0: i32) -> (i32, i32) {
    %c0_i32 = arith.constant 0 : i32
    %c0_i32_0 = arith.constant 0 : i32
    %c0_i32_1 = arith.constant 0 : i32
    return %c0_i32, %c0_i32_0 : i32, i32
  }
  func.func @transform_6(%arg0: i32) -> (i32, i32) {
    %c0_i32 = arith.constant 0 : i32
    %c0_i32_0 = arith.constant 0 : i32
    %c0_i32_1 = arith.constant 0 : i32
    return %c0_i32, %c0_i32_0 : i32, i32
  }
  func.func @transform_7(%arg0: i32) -> (i32, i32) {
    %c0_i32 = arith.constant 0 : i32
    %c0_i32_0 = arith.constant 0 : i32
    %c0_i32_1 = arith.constant 0 : i32
    return %c0_i32, %c0_i32_0 : i32, i32
  }
  func.func @transform_8(%arg0: i32) -> (i32, i32) {
    %c0_i32 = arith.constant 0 : i32
    %c0_i32_0 = arith.constant 0 : i32
    %c0_i32_1 = arith.constant 0 : i32
    return %c0_i32, %c0_i32_0 : i32, i32
  }
  func.func @transform_9(%arg0: i32) -> (i32, i32, i32) {
    %c0_i32 = arith.constant 0 : i32
    %c0_i32_0 = arith.constant 0 : i32
    %c0_i32_1 = arith.constant 0 : i32
    return %arg0, %c0_i32, %c0_i32_0 : i32, i32, i32
  }
}

</mosaic_0001>

<llo_original>
// kernel: tile.28
$region0: #{tile.28}
  #allocation0 [shape = 's32[1]{0}', space=sflag, size = 0x4, scoped, tag = 'scoped memory for tile.28']
  %s0 = inlined_call_operand.vmem [shape: f32[8], index: 0, kind: input, shape index: {}]
  %s1 = inlined_call_operand.vmem [shape: f32[16,8], index: 1, kind: output, shape index: {}]
  // Predicated region
  $region2: #{tile.28} parent=0 // pred_check
    _
  $region3: #{tile.28} parent=0 // pred_check_branch
    %3 = sbr.rel (0) target = $region5
  $region4: #{tile.28} parent=0 // pred_region
    _
  $region5: #{tile.28} parent=0 // pred_fallthru
    _
  %v4 = vld [vmem:[%s0] ss:$0 sm:$0xff]
  %5 = vst [vmem:[%s1] sm:$0xff] %v4
  %s6 = scalar_lea.vmem %s1, 8
  %7 = vst [vmem:[%s6] sm:$0xff] %v4

// kernel: tile.29
$region0: #{tile.29}
  %s0 = inlined_call_operand.vmem [shape: f32[16,8], index: 0, kind: input, shape index: {}]
  %s1 = inlined_call_operand.vmem [shape: f32[1,128], index: 1, kind: output, shape index: {}]
  $region1: #{tile.29} parent=0
    #allocation0 [shape = 'u8[4096]{0}', space=vmem, size = 0x1000, scoped, tag = 'scoped mem for output reshape']
    %v2 = vld [vmem:[%s0] sm:$0x1]
    %vm3 = vcmask 64512
    %4 = vst.msk [vmem:[#allocation0] sm:$0x1] %vm3, %v2
    %s5 = scalar_lea.vmem %s0, 15
    %v6 = vld [vmem:[%s5] sm:$0x1]
    %7 = vrot.lane.b32.xlu0 %v6, 120
    %v8 = vpop.permute.xlu0 %7
    %vm9 = vcmask 1048512
    %10 = vst.msk [vmem:[#allocation0] sm:$0x1] %vm9, %v8
    %s11 = scalar_lea.vmem %s0, 14
    %v12 = vld [vmem:[%s11] sm:$0x1]
    %13 = vrot.lane.b32.xlu0 %v12, 112
    %v14 = vpop.permute.xlu0 %13
    %vm15 = vcmask 982912
    %16 = vst.msk [vmem:[#allocation0] sm:$0x1] %vm15, %v14
    %s17 = scalar_lea.vmem %s0, 13
    %v18 = vld [vmem:[%s17] sm:$0x1]
    %19 = vrot.lane.b32.xlu0 %v18, 104
    %v20 = vpop.permute.xlu0 %19
    %vm21 = vcmask 917312
    %22 = vst.msk [vmem:[#allocation0] sm:$0x1] %vm21, %v20
    %s23 = scalar_lea.vmem %s0, 12
    %v24 = vld [vmem:[%s23] sm:$0x1]
    %25 = vrot.lane.b32.xlu0 %v24, 96
    %v26 = vpop.permute.xlu0 %25
    %vm27 = vcmask 851712
    %28 = vst.msk [vmem:[#allocation0] sm:$0x1] %vm27, %v26
    %s29 = scalar_lea.vmem %s0, 11
    %v30 = vld [vmem:[%s29] sm:$0x1]
    %31 = vrot.lane.b32.xlu0 %v30, 88
    %v32 = vpop.permute.xlu0 %31
    %vm33 = vcmask 786112
    %34 = vst.msk [vmem:[#allocation0] sm:$0x1] %vm33, %v32
    %s35 = scalar_lea.vmem %s0, 10
    %v36 = vld [vmem:[%s35] sm:$0x1]
    %37 = vrot.lane.b32.xlu0 %v36, 80
    %v38 = vpop.permute.xlu0 %37
    %vm39 = vcmask 720512
    %40 = vst.msk [vmem:[#allocation0] sm:$0x1] %vm39, %v38
    %s41 = scalar_lea.vmem %s0, 9
    %v42 = vld [vmem:[%s41] sm:$0x1]
    %43 = vrot.lane.b32.xlu0 %v42, 72
    %v44 = vpop.permute.xlu0 %43
    %vm45 = vcmask 654912
    %46 = vst.msk [vmem:[#allocation0] sm:$0x1] %vm45, %v44
    %s47 = scalar_lea.vmem %s0, 8
    %v48 = vld [vmem:[%s47] sm:$0x1]
    %49 = vrot.lane.b32.xlu0 %v48, 64
    %v50 = vpop.permute.xlu0 %49
    %vm51 = vcmask 589312
    %52 = vst.msk [vmem:[#allocation0] sm:$0x1] %vm51, %v50
    %s53 = scalar_lea.vmem %s0, 7
    %v54 = vld [vmem:[%s53] sm:$0x1]
    %55 = vrot.lane.b32.xlu0 %v54, 56
    %v56 = vpop.permute.xlu0 %55
    %vm57 = vcmask 523712
    %58 = vst.msk [vmem:[#allocation0] sm:$0x1] %vm57, %v56
    %s59 = scalar_lea.vmem %s0, 6
    %v60 = vld [vmem:[%s59] sm:$0x1]
    %61 = vrot.lane.b32.xlu0 %v60, 48
    %v62 = vpop.permute.xlu0 %61
    %vm63 = vcmask 458112
    %64 = vst.msk [vmem:[#allocation0] sm:$0x1] %vm63, %v62
    %s65 = scalar_lea.vmem %s0, 5
    %v66 = vld [vmem:[%s65] sm:$0x1]
    %67 = vrot.lane.b32.xlu0 %v66, 40
    %v68 = vpop.permute.xlu0 %67
    %vm69 = vcmask 392512
    %70 = vst.msk [vmem:[#allocation0] sm:$0x1] %vm69, %v68
    %s71 = scalar_lea.vmem %s0, 4
    %v72 = vld [vmem:[%s71] sm:$0x1]
    %73 = vrot.lane.b32.xlu0 %v72, 32
    %v74 = vpop.permute.xlu0 %73
    %vm75 = vcmask 326912
    %76 = vst.msk [vmem:[#allocation0] sm:$0x1] %vm75, %v74
    %s77 = scalar_lea.vmem %s0, 3
    %v78 = vld [vmem:[%s77] sm:$0x1]
    %79 = vrot.lane.b32.xlu0 %v78, 24
    %v80 = vpop.permute.xlu0 %79
    %vm81 = vcmask 261312
    %82 = vst.msk [vmem:[#allocation0] sm:$0x1] %vm81, %v80
    %s83 = scalar_lea.vmem %s0, 2
    %v84 = vld [vmem:[%s83] sm:$0x1]
    %85 = vrot.lane.b32.xlu0 %v84, 16
    %v86 = vpop.permute.xlu0 %85
    %vm87 = vcmask 195712
    %88 = vst.msk [vmem:[#allocation0] sm:$0x1] %vm87, %v86
    %s89 = scalar_lea.vmem %s0, 1
    %v90 = vld [vmem:[%s89] sm:$0x1]
    %91 = vrot.lane.b32.xlu0 %v90, 8
    %v92 = vpop.permute.xlu0 %91
    %vm93 = vcmask 130112
    %94 = vst.msk [vmem:[#allocation0] sm:$0x1] %vm93, %v92
    %s96 = sshll.u32 1, 1
    %s97 = ssub.s32 %s96, 1
    %v99 = vld [vmem:[#allocation0] sm:%s97]
    %s100 = sshll.u32 1, 1
    %s101 = ssub.s32 %s100, 1
    %102 = vst [vmem:[%s1] sm:%s101] %v99

// kernel: resblock_forward.1
$region0: #{resblock_forward.1}
  #allocation0 [shape = 'u32[]', space=smem, size = 0x4, offset = 0x4, fixed_abs, tag = 'smem constant byte address 0x4 - core index']
  #allocation1 [shape = 'u32[144,128]{1,0:T(1,128)}', space=vmem, size = 0x12000, scoped, tag = 'internal scratch']
  #allocation2 [shape = 'f32[18,128]{1,0:T(8,128)}', space=vmem, size = 0x3000, scoped, tag = 'scratch operand']
  %s0 = inlined_call_operand.vmem [shape: f32[2,18,64], index: 0, kind: input, shape index: {}]
  %s1 = inlined_call_operand.vmem [shape: f32[3,64,128], index: 1, kind: input, shape index: {}]
  %s2 = inlined_call_operand.vmem [shape: f32[1,128], index: 2, kind: input, shape index: {}]
  %s3 = inlined_call_operand.vmem [shape: f32[1,128], index: 3, kind: input, shape index: {}]
  %s4 = inlined_call_operand.vmem [shape: f32[3,128,128], index: 4, kind: input, shape index: {}]
  %s5 = inlined_call_operand.vmem [shape: f32[1,128], index: 5, kind: input, shape index: {}]
  %s6 = inlined_call_operand.vmem [shape: f32[1,128], index: 6, kind: input, shape index: {}]
  %s7 = inlined_call_operand.vmem [shape: f32[64,128], index: 7, kind: input, shape index: {}]
  %s8 = inlined_call_operand.vmem [shape: f32[1,128], index: 8, kind: input, shape index: {}]
  %s9 = inlined_call_operand.vmem [shape: f32[2,16,128], index: 9, kind: output, shape index: {}]
  %s10 = sld [smem:[#allocation0]]
  $region69: #{resblock_forward.1} parent=0
    _
  %s12 = ssub.s32 1, %s10
  %s13 = scalar_select 0, %s12, %s10
  loop: start=0, step=1, limit=4
  $region2: #{resblock_forward.1} parent=0 // loop_pre_header
    _
  $region3: #{resblock_forward.1} parent=0 // loop_header
    %s15 = sphi 0, %s19
    %p16 = scmp.ge.s32.totalorder %s15, 4
    %s25 = sphi 0, %s27
    %s28 = sphi 0, %s25
    %s29 = sphi 0, %s28
    %s45 = sphi 0, %s29
    %s49 = sphi 0, %s49
    %s51 = sphi 0, %s49
    %s52 = sphi 0, %s51
    %s66 = sphi 0, %s52
    %s70 = sphi 0, %s70
    %s72 = sphi 0, %s70
    %s73 = sphi 0, %s72
    %s87 = sphi 0, %s73
    %s91 = sphi 0, %s91
    %s93 = sphi 0, %s91
    %s94 = sphi 0, %s93
    %s108 = sphi 0, %s94
    %s112 = sphi 0, %s112
    %s114 = sphi 0, %s112
    %s115 = sphi 0, %s114
    %s129 = sphi 0, %s115
    %s133 = sphi 0, %s133
    %s135 = sphi 0, %s133
    %s136 = sphi 0, %s135
    %s150 = sphi 0, %s136
    %s154 = sphi 0, %s154
    %s156 = sphi 0, %s154
    %s157 = sphi 0, %s156
    %s171 = sphi 0, %s157
    %s175 = sphi 0, %s175
    %s177 = sphi 0, %s175
    %s178 = sphi 0, %s177
    %s192 = sphi 0, %s178
    %s196 = sphi 0, %s196
    %s198 = sphi 0, %s196
    %s199 = sphi 0, %s198
    %s213 = sphi 0, %s199
    %s219 = sphi 0, %s221
    %s222 = sphi 0, %s219
    %s223 = sphi 0, %s222
    %s239 = sphi 0, %s223
  $region4: #{resblock_forward.1} parent=0 // loop_header_branch
    %18 = sbr.rel (%p16) target = $region8
  $region5: #{resblock_forward.1} parent=0 // loop_body
    %s20 = ssub.s32 %s15, 1
    %s21 = ssub.s32 %s15, 2
    %s22 = sadd.s32 %s15, 1
    %s23 = ssub.s32 %s15, %s22
    %p24 = scmp.eq.s32.totalorder %s23, 0
    %s26 = sadd.s32 %s25, 1
    %s27 = scalar_select %p24, %s25, %s26
    %p30 = pneg %p24
    %p31 = scmp.eq.s32.totalorder %s15, 1
    %p32 = por %p30, %p31
    %p33 = scmp.ne.s32.totalorder %s25, %s28
    %p34 = scmp.eq.s32.totalorder %s15, 0
    %p35 = por %p33, %p34
    %p36 = scmp.ne.s32.totalorder %s25, %s28
    %p37 = scmp.eq.s32.totalorder %s20, 1
    %p38 = por %p36, %p37
    %p39 = scmp.ne.s32.totalorder %s28, %s29
    %p40 = scmp.eq.s32.totalorder %s20, 0
    %p41 = por %p39, %p40
    %p42 = scmp.ne.s32.totalorder %s28, %s29
    %p43 = scmp.eq.s32.totalorder %s21, 1
    %p44 = por %p42, %p43
    %p46 = scmp.ne.s32.totalorder %s29, %s45
    %p47 = scmp.eq.s32.totalorder %s21, 0
    %p48 = por %p46, %p47
    %s50 = sadd.s32 %s49, 1
    %p53 = scmp.eq.s32.totalorder %s15, 1
    %p54 = scmp.ne.s32.totalorder %s49, %s51
    %p55 = scmp.eq.s32.totalorder %s15, 0
    %p56 = por %p54, %p55
    %p57 = scmp.ne.s32.totalorder %s49, %s51
    %p58 = scmp.eq.s32.totalorder %s20, 1
    %p59 = por %p57, %p58
    %p60 = scmp.ne.s32.totalorder %s51, %s52
    %p61 = scmp.eq.s32.totalorder %s20, 0
    %p62 = por %p60, %p61
    %p63 = scmp.ne.s32.totalorder %s51, %s52
    %p64 = scmp.eq.s32.totalorder %s21, 1
    %p65 = por %p63, %p64
    %p67 = scmp.ne.s32.totalorder %s52, %s66
    %p68 = scmp.eq.s32.totalorder %s21, 0
    %p69 = por %p67, %p68
    %s71 = sadd.s32 %s70, 1
    %p74 = scmp.eq.s32.totalorder %s15, 1
    %p75 = scmp.ne.s32.totalorder %s70, %s72
    %p76 = scmp.eq.s32.totalorder %s15, 0
    %p77 = por %p75, %p76
    %p78 = scmp.ne.s32.totalorder %s70, %s72
    %p79 = scmp.eq.s32.totalorder %s20, 1
    %p80 = por %p78, %p79
    %p81 = scmp.ne.s32.totalorder %s72, %s73
    %p82 = scmp.eq.s32.totalorder %s20, 0
    %p83 = por %p81, %p82
    %p84 = scmp.ne.s32.totalorder %s72, %s73
    %p85 = scmp.eq.s32.totalorder %s21, 1
    %p86 = por %p84, %p85
    %p88 = scmp.ne.s32.totalorder %s73, %s87
    %p89 = scmp.eq.s32.totalorder %s21, 0
    %p90 = por %p88, %p89
    %s92 = sadd.s32 %s91, 1
    %p95 = scmp.eq.s32.totalorder %s15, 1
    %p96 = scmp.ne.s32.totalorder %s91, %s93
    %p97 = scmp.eq.s32.totalorder %s15, 0
    %p98 = por %p96, %p97
    %p99 = scmp.ne.s32.totalorder %s91, %s93
    %p100 = scmp.eq.s32.totalorder %s20, 1
    %p101 = por %p99, %p100
    %p102 = scmp.ne.s32.totalorder %s93, %s94
    %p103 = scmp.eq.s32.totalorder %s20, 0
    %p104 = por %p102, %p103
    %p105 = scmp.ne.s32.totalorder %s93, %s94
    %p106 = scmp.eq.s32.totalorder %s21, 1
    %p107 = por %p105, %p106
    %p109 = scmp.ne.s32.totalorder %s94, %s108
    %p110 = scmp.eq.s32.totalorder %s21, 0
    %p111 = por %p109, %p110
    %s113 = sadd.s32 %s112, 1
    %p116 = scmp.eq.s32.totalorder %s15, 1
    %p117 = scmp.ne.s32.totalorder %s112, %s114
    %p118 = scmp.eq.s32.totalorder %s15, 0
    %p119 = por %p117, %p118
    %p120 = scmp.ne.s32.totalorder %s112, %s114
    %p121 = scmp.eq.s32.totalorder %s20, 1
    %p122 = por %p120, %p121
    %p123 = scmp.ne.s32.totalorder %s114, %s115
    %p124 = scmp.eq.s32.totalorder %s20, 0
    %p125 = por %p123, %p124
    %p126 = scmp.ne.s32.totalorder %s114, %s115
    %p127 = scmp.eq.s32.totalorder %s21, 1
    %p128 = por %p126, %p127
    %p130 = scmp.ne.s32.totalorder %s115, %s129
    %p131 = scmp.eq.s32.totalorder %s21, 0
    %p132 = por %p130, %p131
    %s134 = sadd.s32 %s133, 1
    %p137 = scmp.eq.s32.totalorder %s15, 1
    %p138 = scmp.ne.s32.totalorder %s133, %s135
    %p139 = scmp.eq.s32.totalorder %s15, 0
    %p140 = por %p138, %p139
    %p141 = scmp.ne.s32.totalorder %s133, %s135
    %p142 = scmp.eq.s32.totalorder %s20, 1
    %p143 = por %p141, %p142
    %p144 = scmp.ne.s32.totalorder %s135, %s136
    %p145 = scmp.eq.s32.totalorder %s20, 0
    %p146 = por %p144, %p145
    %p147 = scmp.ne.s32.totalorder %s135, %s136
    %p148 = scmp.eq.s32.totalorder %s21, 1
    %p149 = por %p147, %p148
    %p151 = scmp.ne.s32.totalorder %s136, %s150
    %p152 = scmp.eq.s32.totalorder %s21, 0
    %p153 = por %p151, %p152
    %s155 = sadd.s32 %s154, 1
    %p158 = scmp.eq.s32.totalorder %s15, 1
    %p159 = scmp.ne.s32.totalorder %s154, %s156
    %p160 = scmp.eq.s32.totalorder %s15, 0
    %p161 = por %p159, %p160
    %p162 = scmp.ne.s32.totalorder %s154, %s156
    %p163 = scmp.eq.s32.totalorder %s20, 1
    %p164 = por %p162, %p163
    %p165 = scmp.ne.s32.totalorder %s156, %s157
    %p166 = scmp.eq.s32.totalorder %s20, 0
    %p167 = por %p165, %p166
    %p168 = scmp.ne.s32.totalorder %s156, %s157
    %p169 = scmp.eq.s32.totalorder %s21, 1
    %p170 = por %p168, %p169
    %p172 = scmp.ne.s32.totalorder %s157, %s171
    %p173 = scmp.eq.s32.totalorder %s21, 0
    %p174 = por %p172, %p173
    %s176 = sadd.s32 %s175, 1
    %p179 = scmp.eq.s32.totalorder %s15, 1
    %p180 = scmp.ne.s32.totalorder %s175, %s177
    %p181 = scmp.eq.s32.totalorder %s15, 0
    %p182 = por %p180, %p181
    %p183 = scmp.ne.s32.totalorder %s175, %s177
    %p184 = scmp.eq.s32.totalorder %s20, 1
    %p185 = por %p183, %p184
    %p186 = scmp.ne.s32.totalorder %s177, %s178
    %p187 = scmp.eq.s32.totalorder %s20, 0
    %p188 = por %p186, %p187
    %p189 = scmp.ne.s32.totalorder %s177, %s178
    %p190 = scmp.eq.s32.totalorder %s21, 1
    %p191 = por %p189, %p190
    %p193 = scmp.ne.s32.totalorder %s178, %s192
    %p194 = scmp.eq.s32.totalorder %s21, 0
    %p195 = por %p193, %p194
    %s197 = sadd.s32 %s196, 1
    %p200 = scmp.eq.s32.totalorder %s15, 1
    %p201 = scmp.ne.s32.totalorder %s196, %s198
    %p202 = scmp.eq.s32.totalorder %s15, 0
    %p203 = por %p201, %p202
    %p204 = scmp.ne.s32.totalorder %s196, %s198
    %p205 = scmp.eq.s32.totalorder %s20, 1
    %p206 = por %p204, %p205
    %p207 = scmp.ne.s32.totalorder %s198, %s199
    %p208 = scmp.eq.s32.totalorder %s20, 0
    %p209 = por %p207, %p208
    %p210 = scmp.ne.s32.totalorder %s198, %s199
    %p211 = scmp.eq.s32.totalorder %s21, 1
    %p212 = por %p210, %p211
    %p214 = scmp.ne.s32.totalorder %s199, %s213
    %p215 = scmp.eq.s32.totalorder %s21, 0
    %p216 = por %p214, %p215
    %s217 = ssub.s32 %s15, %s22
    %p218 = scmp.eq.s32.totalorder %s217, 0
    %s220 = sadd.s32 %s219, 1
    %s221 = scalar_select %p218, %s219, %s220
    %p224 = pneg %p218
    %p225 = scmp.eq.s32.totalorder %s15, 1
    %p226 = por %p224, %p225
    %p227 = scmp.ne.s32.totalorder %s219, %s222
    %p228 = scmp.eq.s32.totalorder %s15, 0
    %p229 = por %p227, %p228
    %p230 = scmp.ne.s32.totalorder %s219, %s222
    %p231 = scmp.eq.s32.totalorder %s20, 1
    %p232 = por %p230, %p231
    %p233 = scmp.ne.s32.totalorder %s222, %s223
    %p234 = scmp.eq.s32.totalorder %s20, 0
    %p235 = por %p233, %p234
    %p236 = scmp.ne.s32.totalorder %s222, %s223
    %p237 = scmp.eq.s32.totalorder %s21, 1
    %p238 = por %p236, %p237
    %p240 = scmp.ne.s32.totalorder %s223, %s239
    %p241 = scmp.eq.s32.totalorder %s21, 0
    %p242 = por %p240, %p241
    %p243 = scmp.le.s32.totalorder 1, %s15
    %p244 = scmp.lt.s32.totalorder %s15, 3
    %p245 = pnand %p243, %p244
    %p246 = pneg %p245
    // Predicated region
    $region9: #{resblock_forward.1} parent=5 // pred_check
      _
    $region10: #{resblock_forward.1} parent=5 // pred_check_branch
      %248 = sbr.rel (%p245) target = $region12
    $region11: #{resblock_forward.1} parent=5 // pred_region
      %s249 = ssub.s32 %s15, 1
      // Predicated region
      $region13: #{resblock_forward.1} parent=11 // pred_check
        %p250 = pneg %p62
      $region14: #{resblock_forward.1} parent=11 // pred_check_branch
        %252 = sbr.rel (%p250) target = $region16
      $region15: #{resblock_forward.1} parent=11 // pred_region
        _
      $region16: #{resblock_forward.1} parent=11 // pred_fallthru
        _
      // Predicated region
      $region17: #{resblock_forward.1} parent=11 // pred_check
        %p253 = pneg %p83
      $region18: #{resblock_forward.1} parent=11 // pred_check_branch
        %255 = sbr.rel (%p253) target = $region20
      $region19: #{resblock_forward.1} parent=11 // pred_region
        _
      $region20: #{resblock_forward.1} parent=11 // pred_fallthru
        _
      // Predicated region
      $region21: #{resblock_forward.1} parent=11 // pred_check
        %p256 = pneg %p104
      $region22: #{resblock_forward.1} parent=11 // pred_check_branch
        %258 = sbr.rel (%p256) target = $region24
      $region23: #{resblock_forward.1} parent=11 // pred_region
        _
      $region24: #{resblock_forward.1} parent=11 // pred_fallthru
        _
      // Predicated region
      $region25: #{resblock_forward.1} parent=11 // pred_check
        %p259 = pneg %p125
      $region26: #{resblock_forward.1} parent=11 // pred_check_branch
        %261 = sbr.rel (%p259) target = $region28
      $region27: #{resblock_forward.1} parent=11 // pred_region
        _
      $region28: #{resblock_forward.1} parent=11 // pred_fallthru
        _
      // Predicated region
      $region29: #{resblock_forward.1} parent=11 // pred_check
        %p262 = pneg %p146
      $region30: #{resblock_forward.1} parent=11 // pred_check_branch
        %264 = sbr.rel (%p262) target = $region32
      $region31: #{resblock_forward.1} parent=11 // pred_region
        _
      $region32: #{resblock_forward.1} parent=11 // pred_fallthru
        _
      // Predicated region
      $region33: #{resblock_forward.1} parent=11 // pred_check
        %p265 = pneg %p167
      $region34: #{resblock_forward.1} parent=11 // pred_check_branch
        %267 = sbr.rel (%p265) target = $region36
      $region35: #{resblock_forward.1} parent=11 // pred_region
        _
      $region36: #{resblock_forward.1} parent=11 // pred_fallthru
        _
      // Predicated region
      $region37: #{resblock_forward.1} parent=11 // pred_check
        %p268 = pneg %p188
      $region38: #{resblock_forward.1} parent=11 // pred_check_branch
        %270 = sbr.rel (%p268) target = $region40
      $region39: #{resblock_forward.1} parent=11 // pred_region
        _
      $region40: #{resblock_forward.1} parent=11 // pred_fallthru
        _
      // Predicated region
      $region41: #{resblock_forward.1} parent=11 // pred_check
        %p271 = pneg %p209
      $region42: #{resblock_forward.1} parent=11 // pred_check_branch
        %273 = sbr.rel (%p271) target = $region44
      $region43: #{resblock_forward.1} parent=11 // pred_region
        _
      $region44: #{resblock_forward.1} parent=11 // pred_fallthru
        _
    $region12: #{resblock_forward.1} parent=5 // pred_fallthru
      _
    %p274 = scmp.lt.s32.totalorder %s15, 2
    // Predicated region
    $region45: #{resblock_forward.1} parent=5 // pred_check
      %p275 = pneg %p274
    $region46: #{resblock_forward.1} parent=5 // pred_check_branch
      %277 = sbr.rel (%p275) target = $region48
    $region47: #{resblock_forward.1} parent=5 // pred_region
      // Predicated region
      $region49: #{resblock_forward.1} parent=47 // pred_check
        %p278 = pneg %p35
      $region50: #{resblock_forward.1} parent=47 // pred_check_branch
        %280 = sbr.rel (%p278) target = $region52
      $region51: #{resblock_forward.1} parent=47 // pred_region
        %p281 = scmp.lt.s32.totalorder %s15, 1
        %s282 = scalar_select %p281, %s15, 1
        %s283 = smul.addr %s282, 3
        %s284 = smul.addr %s283, 8
        %s285 = scalar_lea.vmem %s0, %s284
      $region52: #{resblock_forward.1} parent=47 // pred_fallthru
        _
    $region48: #{resblock_forward.1} parent=5 // pred_fallthru
      _
    %p286 = scmp.le.s32.totalorder 1, %s15
    %p287 = scmp.lt.s32.totalorder %s15, 3
    %p288 = pnand %p286, %p287
    %p289 = pneg %p288
    // Predicated region
    $region53: #{resblock_forward.1} parent=5 // pred_check
      _
    $region54: #{resblock_forward.1} parent=5 // pred_check_branch
      %291 = sbr.rel (%p288) target = $region56
    $region55: #{resblock_forward.1} parent=5 // pred_region
      %s292 = ssub.s32 %s15, 1
      %p293 = scmp.lt.s32.totalorder %s20, 1
      %s294 = scalar_select %p293, %s20, 1
      %s295 = smul.addr %s294, 3
      %s296 = smul.addr %s295, 8
      %s297 = scalar_lea.vmem %s0, %s296
      %p298 = pneg %p41
      %p299 = pneg %p38
      %p300 = pneg %p62
      %p301 = pneg %p59
      %p302 = pneg %p83
      %p303 = pneg %p80
      %p304 = pneg %p104
      %p305 = pneg %p101
      %p306 = pneg %p125
      %p307 = pneg %p122
      %p308 = pneg %p146
      %p309 = pneg %p143
      %p310 = pneg %p167
      %p311 = pneg %p164
      %p312 = pneg %p188
      %p313 = pneg %p185
      %p314 = pneg %p209
      %p315 = pneg %p206
      %p316 = pneg %p235
      %p317 = pneg %p232
      %p318 = scmp.lt.s32.totalorder %s20, 1
      %s319 = scalar_select %p318, %s20, 1
      %s320 = smul.addr %s319, 2
      %s321 = smul.addr %s320, 8
      %s322 = scalar_lea.vmem %s9, %s321
      %p323 = scmp.lt.s32.totalorder %s20, 1
      %s324 = scalar_select %p323, %s20, 1
      %s325 = smul.addr %s324, 3
      %s326 = smul.addr %s325, 8
      %s327 = scalar_lea.vmem %s0, %s326
      %p328 = scmp.lt.s32.totalorder %s20, 1
      %s329 = scalar_select %p328, %s20, 1
      %s330 = smul.addr %s329, 2
      %s331 = smul.addr %s330, 8
      %s332 = scalar_lea.vmem %s9, %s331
      %v333 = vld [vmem:[%s327] sm:$0xff]
      %v334 = vld [vmem:[%s327 + $0x8] sm:$0xff]
      %v335 = vld [vmem:[%s327 + $0x10] sm:$0x3]
      %v336 = vld [vmem:[%s1] sm:$0xff]
      %v337 = vld [vmem:[%s1 + $0x8] sm:$0xff]
      %v338 = vld [vmem:[%s1 + $0x10] sm:$0xff]
      %v339 = vld [vmem:[%s1 + $0x18] sm:$0xff]
      %v340 = vld [vmem:[%s1 + $0x20] sm:$0xff]
      %v341 = vld [vmem:[%s1 + $0x28] sm:$0xff]
      %v342 = vld [vmem:[%s1 + $0x30] sm:$0xff]
      %v343 = vld [vmem:[%s1 + $0x38] sm:$0xff]
      %s344 = scalar_lea.vmem %s1, 64
      %v345 = vld [vmem:[%s344] sm:$0xff]
      %v346 = vld [vmem:[%s344 + $0x8] sm:$0xff]
      %v347 = vld [vmem:[%s344 + $0x10] sm:$0xff]
      %v348 = vld [vmem:[%s344 + $0x18] sm:$0xff]
      %v349 = vld [vmem:[%s344 + $0x20] sm:$0xff]
      %v350 = vld [vmem:[%s344 + $0x28] sm:$0xff]
      %v351 = vld [vmem:[%s344 + $0x30] sm:$0xff]
      %v352 = vld [vmem:[%s344 + $0x38] sm:$0xff]
      %vm356 = vcmask 1046528
      %v357 = vrot.slane %v333, 1
      %v358 = vrot.slane %v334, 1
      %v359 = vsel %vm356, %v357, %v358
      %v360 = vrot.slane %v335, 1
      %v361 = vsel %vm356, %v358, %v360
      %vm362 = vcmask 523264
      %v363 = vsel %vm362, %v359, 0
      %v365 = vsel %vm362, %v361, 0
      %367 = vmatprep.subr.mxu0 0.0
      %368 = vmatpush1.msra.mxu0 0.0
      %369 = vmatprep.subr.mxu0 0.0
      %370 = vmatpush1.msra.mxu0 0.0
      %371 = vmatprep.subr.mxu0 0.0
      %372 = vmatpush1.msra.mxu0 0.0
      %373 = vmatprep.subr.mxu0 0.0
      %374 = vmatpush1.msra.mxu0 0.0
      %375 = vmatprep.subr.mxu0 0.0
      %376 = vmatpush1.msra.mxu0 0.0
      %377 = vmatprep.subr.mxu0 0.0
      %378 = vmatpush1.msra.mxu0 0.0
      %379 = vmatprep.subr.mxu0 0.0
      %380 = vmatpush1.msra.mxu0 0.0
      %381 = vmatprep.subr.mxu0 0.0
      %382 = vmatpush1.msra.mxu0 0.0
      %383 = vmatprep.subr.mxu0 0.0
      %384 = vmatpush1.msra.mxu0 %v352
      %385 = vmatprep.subr.mxu0 0.0
      %386 = vmatpush1.msra.mxu0 %v351
      %387 = vmatprep.subr.mxu0 0.0
      %388 = vmatpush1.msra.mxu0 %v350
      %389 = vmatprep.subr.mxu0 0.0
      %390 = vmatpush1.msra.mxu0 %v349
      %391 = vmatprep.subr.mxu0 0.0
      %392 = vmatpush1.msra.mxu0 %v348
      %393 = vmatprep.subr.mxu0 0.0
      %394 = vmatpush1.msra.mxu0 %v347
      %395 = vmatprep.subr.mxu0 0.0
      %396 = vmatpush1.msra.mxu0 %v346
      %397 = vmatprep.subr.mxu0 0.0
      %398 = vmatpush1.msra.mxu0 %v345
      %399 = vmatprep.subr.mxu0 0.0
      %400 = vmatpush2.msra.mxu0 0.0
      %401 = vmatprep.subr.mxu0 0.0
      %402 = vmatpush2.msra.mxu0 0.0
      %403 = vmatprep.subr.mxu0 0.0
      %404 = vmatpush2.msra.mxu0 0.0
      %405 = vmatprep.subr.mxu0 0.0
      %406 = vmatpush2.msra.mxu0 0.0
      %407 = vmatprep.subr.mxu0 0.0
      %408 = vmatpush2.msra.mxu0 0.0
      %409 = vmatprep.subr.mxu0 0.0
      %410 = vmatpush2.msra.mxu0 0.0
      %411 = vmatprep.subr.mxu0 0.0
      %412 = vmatpush2.msra.mxu0 0.0
      %413 = vmatprep.subr.mxu0 0.0
      %414 = vmatpush2.msra.mxu0 0.0
      %415 = vmatprep.subr.mxu0 0.0
      %416 = vmatpush2.msra.mxu0 0.0
      %417 = vmatprep.subr.mxu0 0.0
      %418 = vmatpush2.msra.mxu0 0.0
      %419 = vmatprep.subr.mxu0 0.0
      %420 = vmatpush2.msra.mxu0 0.0
      %421 = vmatprep.subr.mxu0 0.0
      %422 = vmatpush2.msra.mxu0 0.0
      %423 = vmatprep.subr.mxu0 0.0
      %424 = vmatpush2.msra.mxu0 0.0
      %425 = vmatprep.subr.mxu0 0.0
      %426 = vmatpush2.msra.mxu0 0.0
      %427 = vmatprep.subr.mxu0 0.0
      %428 = vmatpush2.msra.mxu0 0.0
      %429 = vmatprep.subr.mxu0 0.0
      %430 = vmatpush2.msra.mxu0 0.0
      %431 = vmatprep.mubr.f32.mxu0 0.0
      %432 = vmatmul.mubr.f32.gmra.mxu0 %v363
      %v433 = vpop.f32.mrf.mxu0
      %v434 = vadd.f32 0.0, %v433
      %v435 = vpop.f32.mrf.mxu0
      %436 = vmatprep.mubr.f32.mxu0 0.0
      %437 = vmatmul.mubr.f32.gmra.mxu0 %v365
      %v438 = vpop.f32.mrf.mxu0
      %v439 = vadd.f32 0.0, %v438
      %v440 = vpop.f32.mrf.mxu0
      %441 = vdwg.mxu0
      %v442 = vsel %vm362, %v333, 0
      %v444 = vsel %vm362, %v334, 0
      %446 = vmatprep.subr.mxu0 0.0
      %447 = vmatpush1.msra.mxu0 0.0
      %448 = vmatprep.subr.mxu0 0.0
      %449 = vmatpush1.msra.mxu0 0.0
      %450 = vmatprep.subr.mxu0 0.0
      %451 = vmatpush1.msra.mxu0 0.0
      %452 = vmatprep.subr.mxu0 0.0
      %453 = vmatpush1.msra.mxu0 0.0
      %454 = vmatprep.subr.mxu0 0.0
      %455 = vmatpush1.msra.mxu0 0.0
      %456 = vmatprep.subr.mxu0 0.0
      %457 = vmatpush1.msra.mxu0 0.0
      %458 = vmatprep.subr.mxu0 0.0
      %459 = vmatpush1.msra.mxu0 0.0
      %460 = vmatprep.subr.mxu0 0.0
      %461 = vmatpush1.msra.mxu0 0.0
      %462 = vmatprep.subr.mxu0 0.0
      %463 = vmatpush1.msra.mxu0 %v343
      %464 = vmatprep.subr.mxu0 0.0
      %465 = vmatpush1.msra.mxu0 %v342
      %466 = vmatprep.subr.mxu0 0.0
      %467 = vmatpush1.msra.mxu0 %v341
      %468 = vmatprep.subr.mxu0 0.0
      %469 = vmatpush1.msra.mxu0 %v340
      %470 = vmatprep.subr.mxu0 0.0
      %471 = vmatpush1.msra.mxu0 %v339
      %472 = vmatprep.subr.mxu0 0.0
      %473 = vmatpush1.msra.mxu0 %v338
      %474 = vmatprep.subr.mxu0 0.0
      %475 = vmatpush1.msra.mxu0 %v337
      %476 = vmatprep.subr.mxu0 0.0
      %477 = vmatpush1.msra.mxu0 %v336
      %478 = vmatprep.subr.mxu0 0.0
      %479 = vmatpush2.msra.mxu0 0.0
      %480 = vmatprep.subr.mxu0 0.0
      %481 = vmatpush2.msra.mxu0 0.0
      %482 = vmatprep.subr.mxu0 0.0
      %483 = vmatpush2.msra.mxu0 0.0
      %484 = vmatprep.subr.mxu0 0.0
      %485 = vmatpush2.msra.mxu0 0.0
      %486 = vmatprep.subr.mxu0 0.0
      %487 = vmatpush2.msra.mxu0 0.0
      %488 = vmatprep.subr.mxu0 0.0
      %489 = vmatpush2.msra.mxu0 0.0
      %490 = vmatprep.subr.mxu0 0.0
      %491 = vmatpush2.msra.mxu0 0.0
      %492 = vmatprep.subr.mxu0 0.0
      %493 = vmatpush2.msra.mxu0 0.0
      %494 = vmatprep.subr.mxu0 0.0
      %495 = vmatpush2.msra.mxu0 0.0
      %496 = vmatprep.subr.mxu0 0.0
      %497 = vmatpush2.msra.mxu0 0.0
      %498 = vmatprep.subr.mxu0 0.0
      %499 = vmatpush2.msra.mxu0 0.0
      %500 = vmatprep.subr.mxu0 0.0
      %501 = vmatpush2.msra.mxu0 0.0
      %502 = vmatprep.subr.mxu0 0.0
      %503 = vmatpush2.msra.mxu0 0.0
      %504 = vmatprep.subr.mxu0 0.0
      %505 = vmatpush2.msra.mxu0 0.0
      %506 = vmatprep.subr.mxu0 0.0
      %507 = vmatpush2.msra.mxu0 0.0
      %508 = vmatprep.subr.mxu0 0.0
      %509 = vmatpush2.msra.mxu0 0.0
      %510 = vmatprep.mubr.f32.mxu0 0.0
      %511 = vmatmul.mubr.f32.gmra.mxu0 %v442
      %v512 = vpop.f32.mrf.mxu0
      %v513 = vadd.f32 %v434, %v512
      %v514 = vpop.f32.mrf.mxu0
      %515 = vmatprep.mubr.f32.mxu0 0.0
      %516 = vmatmul.mubr.f32.gmra.mxu0 %v444
      %v517 = vpop.f32.mrf.mxu0
      %v518 = vadd.f32 %v439, %v517
      %v519 = vpop.f32.mrf.mxu0
      %520 = vdwg.mxu0
      %s521 = scalar_lea.vmem %s1, 128
      %v522 = vld [vmem:[%s521] sm:$0xff]
      %v523 = vld [vmem:[%s521 + $0x8] sm:$0xff]
      %v524 = vld [vmem:[%s521 + $0x10] sm:$0xff]
      %v525 = vld [vmem:[%s521 + $0x18] sm:$0xff]
      %v526 = vld [vmem:[%s521 + $0x20] sm:$0xff]
      %v527 = vld [vmem:[%s521 + $0x28] sm:$0xff]
      %v528 = vld [vmem:[%s521 + $0x30] sm:$0xff]
      %v529 = vld [vmem:[%s521 + $0x38] sm:$0xff]
      %vm530 = vcmask 1045504
      %v531 = vrot.slane %v333, 2
      %v532 = vrot.slane %v334, 2
      %v533 = vsel %vm530, %v531, %v532
      %v534 = vrot.slane %v335, 2
      %v535 = vsel %vm530, %v532, %v534
      %v536 = vsel %vm362, %v533, 0
      %v538 = vsel %vm362, %v535, 0
      %540 = vmatprep.subr.mxu0 0.0
      %541 = vmatpush1.msra.mxu0 0.0
      %542 = vmatprep.subr.mxu0 0.0
      %543 = vmatpush1.msra.mxu0 0.0
      %544 = vmatprep.subr.mxu0 0.0
      %545 = vmatpush1.msra.mxu0 0.0
      %546 = vmatprep.subr.mxu0 0.0
      %547 = vmatpush1.msra.mxu0 0.0
      %548 = vmatprep.subr.mxu0 0.0
      %549 = vmatpush1.msra.mxu0 0.0
      %550 = vmatprep.subr.mxu0 0.0
      %551 = vmatpush1.msra.mxu0 0.0
      %552 = vmatprep.subr.mxu0 0.0
      %553 = vmatpush1.msra.mxu0 0.0
      %554 = vmatprep.subr.mxu0 0.0
      %555 = vmatpush1.msra.mxu0 0.0
      %556 = vmatprep.subr.mxu0 0.0
      %557 = vmatpush1.msra.mxu0 %v529
      %558 = vmatprep.subr.mxu0 0.0
      %559 = vmatpush1.msra.mxu0 %v528
      %560 = vmatprep.subr.mxu0 0.0
      %561 = vmatpush1.msra.mxu0 %v527
      %562 = vmatprep.subr.mxu0 0.0
      %563 = vmatpush1.msra.mxu0 %v526
      %564 = vmatprep.subr.mxu0 0.0
      %565 = vmatpush1.msra.mxu0 %v525
      %566 = vmatprep.subr.mxu0 0.0
      %567 = vmatpush1.msra.mxu0 %v524
      %568 = vmatprep.subr.mxu0 0.0
      %569 = vmatpush1.msra.mxu0 %v523
      %570 = vmatprep.subr.mxu0 0.0
      %571 = vmatpush1.msra.mxu0 %v522
      %572 = vmatprep.subr.mxu0 0.0
      %573 = vmatpush2.msra.mxu0 0.0
      %574 = vmatprep.subr.mxu0 0.0
      %575 = vmatpush2.msra.mxu0 0.0
      %576 = vmatprep.subr.mxu0 0.0
      %577 = vmatpush2.msra.mxu0 0.0
      %578 = vmatprep.subr.mxu0 0.0
      %579 = vmatpush2.msra.mxu0 0.0
      %580 = vmatprep.subr.mxu0 0.0
      %581 = vmatpush2.msra.mxu0 0.0
      %582 = vmatprep.subr.mxu0 0.0
      %583 = vmatpush2.msra.mxu0 0.0
      %584 = vmatprep.subr.mxu0 0.0
      %585 = vmatpush2.msra.mxu0 0.0
      %586 = vmatprep.subr.mxu0 0.0
      %587 = vmatpush2.msra.mxu0 0.0
      %588 = vmatprep.subr.mxu0 0.0
      %589 = vmatpush2.msra.mxu0 0.0
      %590 = vmatprep.subr.mxu0 0.0
      %591 = vmatpush2.msra.mxu0 0.0
      %592 = vmatprep.subr.mxu0 0.0
      %593 = vmatpush2.msra.mxu0 0.0
      %594 = vmatprep.subr.mxu0 0.0
      %595 = vmatpush2.msra.mxu0 0.0
      %596 = vmatprep.subr.mxu0 0.0
      %597 = vmatpush2.msra.mxu0 0.0
      %598 = vmatprep.subr.mxu0 0.0
      %599 = vmatpush2.msra.mxu0 0.0
      %600 = vmatprep.subr.mxu0 0.0
      %601 = vmatpush2.msra.mxu0 0.0
      %602 = vmatprep.subr.mxu0 0.0
      %603 = vmatpush2.msra.mxu0 0.0
      %604 = vmatprep.mubr.f32.mxu0 0.0
      %605 = vmatmul.mubr.f32.gmra.mxu0 %v536
      %v606 = vpop.f32.mrf.mxu0
      %v607 = vadd.f32 0.0, %v606
      %v608 = vpop.f32.mrf.mxu0
      %609 = vmatprep.mubr.f32.mxu0 0.0
      %610 = vmatmul.mubr.f32.gmra.mxu0 %v538
      %v611 = vpop.f32.mrf.mxu0
      %v612 = vadd.f32 0.0, %v611
      %v613 = vpop.f32.mrf.mxu0
      %614 = vdwg.mxu0
      %v615 = vadd.f32 %v513, %v607
      %v616 = vadd.f32 %v518, %v612
      %v617 = vadd.f32 %v615, %v616
      %618 = vadd.xlane.f32.xlu0 %v617
      %v619 = vpop.xlane.xlu0 %618
      %v620 = vrot.slane %v619, 4
      %v621 = vadd.f32 %v619, %v620
      %v622 = vrot.slane %v621, 2
      %v623 = vadd.f32 %v621, %v622
      %v624 = vrot.slane %v623, 1
      %v625 = vadd.f32 %v623, %v624
      %s626 = vtos %v625
      %v627 = vmul.f32 %v615, %v615
      %v628 = vmul.f32 %v616, %v616
      %v629 = vadd.f32 %v627, %v628
      %630 = vadd.xlane.f32.xlu0 %v629
      %v631 = vpop.xlane.xlu0 %630
      %v632 = vrot.slane %v631, 4
      %v633 = vadd.f32 %v631, %v632
      %v634 = vrot.slane %v633, 2
      %v635 = vadd.f32 %v633, %v634
      %v636 = vrot.slane %v635, 1
      %v637 = vadd.f32 %v635, %v636
      %s638 = vtos %v637
      %v639 = vrcp.pop 2048.0
      %s640 = vtos %v639
      %s641 = smul.f32 %s626, %s640
      %v642 = vrcp.pop 2048.0
      %s643 = vtos %v642
      %s644 = smul.f32 %s638, %s643
      %s645 = smul.f32 %s641, %s641
      %s646 = ssub.f32 %s644, %s645
      %v647 = vstv %s641
      %v648 = vsub.f32 %v615, %v647
      %v649 = vsub.f32 %v616, %v647
      %s650 = sadd.f32 %s646, 1e-05
      %v651 = vstv %s650
      %v652 = vrsqrt.pop %v651
      %s653 = vtos %v652
      %v654 = vstv %s653
      %v655 = vmul.f32 %v648, %v654
      %v656 = vmul.f32 %v649, %v654
      %v657 = vld [vmem:[%s2] sm:$0x1]
      %v659 = vlaneseq
      %v660 = vshrl.u32 %v659, 7
      %v661 = vsub.s32 0, %v660
      %v662 = vrot.slane %v657, %v661
      %v664 = vmul.f32 %v655, %v662
      %v665 = vmul.f32 %v656, %v662
      %v666 = vld [vmem:[%s3] sm:$0x1]
      %v668 = vlaneseq
      %v669 = vshrl.u32 %v668, 7
      %v670 = vsub.s32 0, %v669
      %v671 = vrot.slane %v666, %v670
      %v673 = vadd.f32 %v664, %v671
      %v674 = vadd.f32 %v665, %v671
      %v675 = vmax.f32 %v673, 0.0
      %v676 = vmax.f32 %v674, 0.0
      %677 = vst [vmem:[#allocation2] sm:$0x1] 0.0
      %678 = vst [vmem:[#allocation2 + $0x11] sm:$0x1] 0.0
      %679 = vst [vmem:[#allocation2 + $0x1] sm:$0xff] %v675
      %680 = vst [vmem:[#allocation2 + $0x9] sm:$0xff] %v676
      %v681 = vld [vmem:[#allocation2] sm:$0xff]
      %v682 = vld [vmem:[#allocation2 + $0x8] sm:$0xff]
      %v683 = vld [vmem:[#allocation2 + $0x10] sm:$0x3]
      %v684 = vld [vmem:[%s4] sm:$0xff]
      %v685 = vld [vmem:[%s4 + $0x8] sm:$0xff]
      %v686 = vld [vmem:[%s4 + $0x10] sm:$0xff]
      %v687 = vld [vmem:[%s4 + $0x18] sm:$0xff]
      %v688 = vld [vmem:[%s4 + $0x20] sm:$0xff]
      %v689 = vld [vmem:[%s4 + $0x28] sm:$0xff]
      %v690 = vld [vmem:[%s4 + $0x30] sm:$0xff]
      %v691 = vld [vmem:[%s4 + $0x38] sm:$0xff]
      %v692 = vld [vmem:[%s4 + $0x40] sm:$0xff]
      %v693 = vld [vmem:[%s4 + $0x48] sm:$0xff]
      %v694 = vld [vmem:[%s4 + $0x50] sm:$0xff]
      %v695 = vld [vmem:[%s4 + $0x58] sm:$0xff]
      %v696 = vld [vmem:[%s4 + $0x60] sm:$0xff]
      %v697 = vld [vmem:[%s4 + $0x68] sm:$0xff]
      %v698 = vld [vmem:[%s4 + $0x70] sm:$0xff]
      %v699 = vld [vmem:[%s4 + $0x78] sm:$0xff]
      %s700 = scalar_lea.vmem %s4, 128
      %v701 = vld [vmem:[%s700] sm:$0xff]
      %v702 = vld [vmem:[%s700 + $0x8] sm:$0xff]
      %v703 = vld [vmem:[%s700 + $0x10] sm:$0xff]
      %v704 = vld [vmem:[%s700 + $0x18] sm:$0xff]
      %v705 = vld [vmem:[%s700 + $0x20] sm:$0xff]
      %v706 = vld [vmem:[%s700 + $0x28] sm:$0xff]
      %v707 = vld [vmem:[%s700 + $0x30] sm:$0xff]
      %v708 = vld [vmem:[%s700 + $0x38] sm:$0xff]
      %v709 = vld [vmem:[%s700 + $0x40] sm:$0xff]
      %v710 = vld [vmem:[%s700 + $0x48] sm:$0xff]
      %v711 = vld [vmem:[%s700 + $0x50] sm:$0xff]
      %v712 = vld [vmem:[%s700 + $0x58] sm:$0xff]
      %v713 = vld [vmem:[%s700 + $0x60] sm:$0xff]
      %v714 = vld [vmem:[%s700 + $0x68] sm:$0xff]
      %v715 = vld [vmem:[%s700 + $0x70] sm:$0xff]
      %v716 = vld [vmem:[%s700 + $0x78] sm:$0xff]
      %v720 = vrot.slane %v681, 1
      %v721 = vrot.slane %v682, 1
      %v722 = vsel %vm356, %v720, %v721
      %v723 = vrot.slane %v683, 1
      %v724 = vsel %vm356, %v721, %v723
      %727 = vmatprep.subr.mxu0 0.0
      %728 = vmatpush1.msra.mxu0 %v716
      %729 = vmatprep.subr.mxu0 0.0
      %730 = vmatpush1.msra.mxu0 %v715
      %731 = vmatprep.subr.mxu0 0.0
      %732 = vmatpush1.msra.mxu0 %v714
      %733 = vmatprep.subr.mxu0 0.0
      %734 = vmatpush1.msra.mxu0 %v713
      %735 = vmatprep.subr.mxu0 0.0
      %736 = vmatpush1.msra.mxu0 %v712
      %737 = vmatprep.subr.mxu0 0.0
      %738 = vmatpush1.msra.mxu0 %v711
      %739 = vmatprep.subr.mxu0 0.0
      %740 = vmatpush1.msra.mxu0 %v710
      %741 = vmatprep.subr.mxu0 0.0
      %742 = vmatpush1.msra.mxu0 %v709
      %743 = vmatprep.subr.mxu0 0.0
      %744 = vmatpush1.msra.mxu0 %v708
      %745 = vmatprep.subr.mxu0 0.0
      %746 = vmatpush1.msra.mxu0 %v707
      %747 = vmatprep.subr.mxu0 0.0
      %748 = vmatpush1.msra.mxu0 %v706
      %749 = vmatprep.subr.mxu0 0.0
      %750 = vmatpush1.msra.mxu0 %v705
      %751 = vmatprep.subr.mxu0 0.0
      %752 = vmatpush1.msra.mxu0 %v704
      %753 = vmatprep.subr.mxu0 0.0
      %754 = vmatpush1.msra.mxu0 %v703
      %755 = vmatprep.subr.mxu0 0.0
      %756 = vmatpush1.msra.mxu0 %v702
      %757 = vmatprep.subr.mxu0 0.0
      %758 = vmatpush1.msra.mxu0 %v701
      %759 = vmatprep.subr.mxu0 0.0
      %760 = vmatpush2.msra.mxu0 0.0
      %761 = vmatprep.subr.mxu0 0.0
      %762 = vmatpush2.msra.mxu0 0.0
      %763 = vmatprep.subr.mxu0 0.0
      %764 = vmatpush2.msra.mxu0 0.0
      %765 = vmatprep.subr.mxu0 0.0
      %766 = vmatpush2.msra.mxu0 0.0
      %767 = vmatprep.subr.mxu0 0.0
      %768 = vmatpush2.msra.mxu0 0.0
      %769 = vmatprep.subr.mxu0 0.0
      %770 = vmatpush2.msra.mxu0 0.0
      %771 = vmatprep.subr.mxu0 0.0
      %772 = vmatpush2.msra.mxu0 0.0
      %773 = vmatprep.subr.mxu0 0.0
      %774 = vmatpush2.msra.mxu0 0.0
      %775 = vmatprep.subr.mxu0 0.0
      %776 = vmatpush2.msra.mxu0 0.0
      %777 = vmatprep.subr.mxu0 0.0
      %778 = vmatpush2.msra.mxu0 0.0
      %779 = vmatprep.subr.mxu0 0.0
      %780 = vmatpush2.msra.mxu0 0.0
      %781 = vmatprep.subr.mxu0 0.0
      %782 = vmatpush2.msra.mxu0 0.0
      %783 = vmatprep.subr.mxu0 0.0
      %784 = vmatpush2.msra.mxu0 0.0
      %785 = vmatprep.subr.mxu0 0.0
      %786 = vmatpush2.msra.mxu0 0.0
      %787 = vmatprep.subr.mxu0 0.0
      %788 = vmatpush2.msra.mxu0 0.0
      %789 = vmatprep.subr.mxu0 0.0
      %790 = vmatpush2.msra.mxu0 0.0
      %791 = vmatprep.mubr.f32.mxu0 0.0
      %792 = vmatmul.mubr.f32.gmra.mxu0 %v722
      %v793 = vpop.f32.mrf.mxu0
      %v794 = vadd.f32 0.0, %v793
      %v795 = vpop.f32.mrf.mxu0
      %796 = vmatprep.mubr.f32.mxu0 0.0
      %797 = vmatmul.mubr.f32.gmra.mxu0 %v724
      %v798 = vpop.f32.mrf.mxu0
      %v799 = vadd.f32 0.0, %v798
      %v800 = vpop.f32.mrf.mxu0
      %801 = vdwg.mxu0
      %802 = vmatprep.subr.mxu0 0.0
      %803 = vmatpush1.msra.mxu0 %v699
      %804 = vmatprep.subr.mxu0 0.0
      %805 = vmatpush1.msra.mxu0 %v698
      %806 = vmatprep.subr.mxu0 0.0
      %807 = vmatpush1.msra.mxu0 %v697
      %808 = vmatprep.subr.mxu0 0.0
      %809 = vmatpush1.msra.mxu0 %v696
      %810 = vmatprep.subr.mxu0 0.0
      %811 = vmatpush1.msra.mxu0 %v695
      %812 = vmatprep.subr.mxu0 0.0
      %813 = vmatpush1.msra.mxu0 %v694
      %814 = vmatprep.subr.mxu0 0.0
      %815 = vmatpush1.msra.mxu0 %v693
      %816 = vmatprep.subr.mxu0 0.0
      %817 = vmatpush1.msra.mxu0 %v692
      %818 = vmatprep.subr.mxu0 0.0
      %819 = vmatpush1.msra.mxu0 %v691
      %820 = vmatprep.subr.mxu0 0.0
      %821 = vmatpush1.msra.mxu0 %v690
      %822 = vmatprep.subr.mxu0 0.0
      %823 = vmatpush1.msra.mxu0 %v689
      %824 = vmatprep.subr.mxu0 0.0
      %825 = vmatpush1.msra.mxu0 %v688
      %826 = vmatprep.subr.mxu0 0.0
      %827 = vmatpush1.msra.mxu0 %v687
      %828 = vmatprep.subr.mxu0 0.0
      %829 = vmatpush1.msra.mxu0 %v686
      %830 = vmatprep.subr.mxu0 0.0
      %831 = vmatpush1.msra.mxu0 %v685
      %832 = vmatprep.subr.mxu0 0.0
      %833 = vmatpush1.msra.mxu0 %v684
      %834 = vmatprep.subr.mxu0 0.0
      %835 = vmatpush2.msra.mxu0 0.0
      %836 = vmatprep.subr.mxu0 0.0
      %837 = vmatpush2.msra.mxu0 0.0
      %838 = vmatprep.subr.mxu0 0.0
      %839 = vmatpush2.msra.mxu0 0.0
      %840 = vmatprep.subr.mxu0 0.0
      %841 = vmatpush2.msra.mxu0 0.0
      %842 = vmatprep.subr.mxu0 0.0
      %843 = vmatpush2.msra.mxu0 0.0
      %844 = vmatprep.subr.mxu0 0.0
      %845 = vmatpush2.msra.mxu0 0.0
      %846 = vmatprep.subr.mxu0 0.0
      %847 = vmatpush2.msra.mxu0 0.0
      %848 = vmatprep.subr.mxu0 0.0
      %849 = vmatpush2.msra.mxu0 0.0
      %850 = vmatprep.subr.mxu0 0.0
      %851 = vmatpush2.msra.mxu0 0.0
      %852 = vmatprep.subr.mxu0 0.0
      %853 = vmatpush2.msra.mxu0 0.0
      %854 = vmatprep.subr.mxu0 0.0
      %855 = vmatpush2.msra.mxu0 0.0
      %856 = vmatprep.subr.mxu0 0.0
      %857 = vmatpush2.msra.mxu0 0.0
      %858 = vmatprep.subr.mxu0 0.0
      %859 = vmatpush2.msra.mxu0 0.0
      %860 = vmatprep.subr.mxu0 0.0
      %861 = vmatpush2.msra.mxu0 0.0
      %862 = vmatprep.subr.mxu0 0.0
      %863 = vmatpush2.msra.mxu0 0.0
      %864 = vmatprep.subr.mxu0 0.0
      %865 = vmatpush2.msra.mxu0 0.0
      %866 = vmatprep.mubr.f32.mxu0 0.0
      %867 = vmatmul.mubr.f32.gmra.mxu0 %v681
      %v868 = vpop.f32.mrf.mxu0
      %v869 = vadd.f32 %v794, %v868
      %v870 = vpop.f32.mrf.mxu0
      %871 = vmatprep.mubr.f32.mxu0 0.0
      %872 = vmatmul.mubr.f32.gmra.mxu0 %v682
      %v873 = vpop.f32.mrf.mxu0
      %v874 = vadd.f32 %v799, %v873
      %v875 = vpop.f32.mrf.mxu0
      %876 = vdwg.mxu0
      %s877 = scalar_lea.vmem %s4, 256
      %v878 = vld [vmem:[%s877] sm:$0xff]
      %v879 = vld [vmem:[%s877 + $0x8] sm:$0xff]
      %v880 = vld [vmem:[%s877 + $0x10] sm:$0xff]
      %v881 = vld [vmem:[%s877 + $0x18] sm:$0xff]
      %v882 = vld [vmem:[%s877 + $0x20] sm:$0xff]
      %v883 = vld [vmem:[%s877 + $0x28] sm:$0xff]
      %v884 = vld [vmem:[%s877 + $0x30] sm:$0xff]
      %v885 = vld [vmem:[%s877 + $0x38] sm:$0xff]
      %v886 = vld [vmem:[%s877 + $0x40] sm:$0xff]
      %v887 = vld [vmem:[%s877 + $0x48] sm:$0xff]
      %v888 = vld [vmem:[%s877 + $0x50] sm:$0xff]
      %v889 = vld [vmem:[%s877 + $0x58] sm:$0xff]
      %v890 = vld [vmem:[%s877 + $0x60] sm:$0xff]
      %v891 = vld [vmem:[%s877 + $0x68] sm:$0xff]
      %v892 = vld [vmem:[%s877 + $0x70] sm:$0xff]
      %v893 = vld [vmem:[%s877 + $0x78] sm:$0xff]
      %v894 = vrot.slane %v681, 2
      %v895 = vrot.slane %v682, 2
      %v896 = vsel %vm530, %v894, %v895
      %v897 = vrot.slane %v683, 2
      %v898 = vsel %vm530, %v895, %v897
      %901 = vmatprep.subr.mxu0 0.0
      %902 = vmatpush1.msra.mxu0 %v893
      %903 = vmatprep.subr.mxu0 0.0
      %904 = vmatpush1.msra.mxu0 %v892
      %905 = vmatprep.subr.mxu0 0.0
      %906 = vmatpush1.msra.mxu0 %v891
      %907 = vmatprep.subr.mxu0 0.0
      %908 = vmatpush1.msra.mxu0 %v890
      %909 = vmatprep.subr.mxu0 0.0
      %910 = vmatpush1.msra.mxu0 %v889
      %911 = vmatprep.subr.mxu0 0.0
      %912 = vmatpush1.msra.mxu0 %v888
      %913 = vmatprep.subr.mxu0 0.0
      %914 = vmatpush1.msra.mxu0 %v887
      %915 = vmatprep.subr.mxu0 0.0
      %916 = vmatpush1.msra.mxu0 %v886
      %917 = vmatprep.subr.mxu0 0.0
      %918 = vmatpush1.msra.mxu0 %v885
      %919 = vmatprep.subr.mxu0 0.0
      %920 = vmatpush1.msra.mxu0 %v884
      %921 = vmatprep.subr.mxu0 0.0
      %922 = vmatpush1.msra.mxu0 %v883
      %923 = vmatprep.subr.mxu0 0.0
      %924 = vmatpush1.msra.mxu0 %v882
      %925 = vmatprep.subr.mxu0 0.0
      %926 = vmatpush1.msra.mxu0 %v881
      %927 = vmatprep.subr.mxu0 0.0
      %928 = vmatpush1.msra.mxu0 %v880
      %929 = vmatprep.subr.mxu0 0.0
      %930 = vmatpush1.msra.mxu0 %v879
      %931 = vmatprep.subr.mxu0 0.0
      %932 = vmatpush1.msra.mxu0 %v878
      %933 = vmatprep.subr.mxu0 0.0
      %934 = vmatpush2.msra.mxu0 0.0
      %935 = vmatprep.subr.mxu0 0.0
      %936 = vmatpush2.msra.mxu0 0.0
      %937 = vmatprep.subr.mxu0 0.0
      %938 = vmatpush2.msra.mxu0 0.0
      %939 = vmatprep.subr.mxu0 0.0
      %940 = vmatpush2.msra.mxu0 0.0
      %941 = vmatprep.subr.mxu0 0.0
      %942 = vmatpush2.msra.mxu0 0.0
      %943 = vmatprep.subr.mxu0 0.0
      %944 = vmatpush2.msra.mxu0 0.0
      %945 = vmatprep.subr.mxu0 0.0
      %946 = vmatpush2.msra.mxu0 0.0
      %947 = vmatprep.subr.mxu0 0.0
      %948 = vmatpush2.msra.mxu0 0.0
      %949 = vmatprep.subr.mxu0 0.0
      %950 = vmatpush2.msra.mxu0 0.0
      %951 = vmatprep.subr.mxu0 0.0
      %952 = vmatpush2.msra.mxu0 0.0
      %953 = vmatprep.subr.mxu0 0.0
      %954 = vmatpush2.msra.mxu0 0.0
      %955 = vmatprep.subr.mxu0 0.0
      %956 = vmatpush2.msra.mxu0 0.0
      %957 = vmatprep.subr.mxu0 0.0
      %958 = vmatpush2.msra.mxu0 0.0
      %959 = vmatprep.subr.mxu0 0.0
      %960 = vmatpush2.msra.mxu0 0.0
      %961 = vmatprep.subr.mxu0 0.0
      %962 = vmatpush2.msra.mxu0 0.0
      %963 = vmatprep.subr.mxu0 0.0
      %964 = vmatpush2.msra.mxu0 0.0
      %965 = vmatprep.mubr.f32.mxu0 0.0
      %966 = vmatmul.mubr.f32.gmra.mxu0 %v896
      %v967 = vpop.f32.mrf.mxu0
      %v968 = vadd.f32 0.0, %v967
      %v969 = vpop.f32.mrf.mxu0
      %970 = vmatprep.mubr.f32.mxu0 0.0
      %971 = vmatmul.mubr.f32.gmra.mxu0 %v898
      %v972 = vpop.f32.mrf.mxu0
      %v973 = vadd.f32 0.0, %v972
      %v974 = vpop.f32.mrf.mxu0
      %975 = vdwg.mxu0
      %v976 = vadd.f32 %v869, %v968
      %v977 = vadd.f32 %v874, %v973
      %v978 = vadd.f32 %v976, %v977
      %979 = vadd.xlane.f32.xlu0 %v978
      %v980 = vpop.xlane.xlu0 %979
      %v981 = vrot.slane %v980, 4
      %v982 = vadd.f32 %v980, %v981
      %v983 = vrot.slane %v982, 2
      %v984 = vadd.f32 %v982, %v983
      %v985 = vrot.slane %v984, 1
      %v986 = vadd.f32 %v984, %v985
      %s987 = vtos %v986
      %v988 = vmul.f32 %v976, %v976
      %v989 = vmul.f32 %v977, %v977
      %v990 = vadd.f32 %v988, %v989
      %991 = vadd.xlane.f32.xlu0 %v990
      %v992 = vpop.xlane.xlu0 %991
      %v993 = vrot.slane %v992, 4
      %v994 = vadd.f32 %v992, %v993
      %v995 = vrot.slane %v994, 2
      %v996 = vadd.f32 %v994, %v995
      %v997 = vrot.slane %v996, 1
      %v998 = vadd.f32 %v996, %v997
      %s999 = vtos %v998
      %v1000 = vrcp.pop 2048.0
      %s1001 = vtos %v1000
      %s1002 = smul.f32 %s987, %s1001
      %v1003 = vrcp.pop 2048.0
      %s1004 = vtos %v1003
      %s1005 = smul.f32 %s999, %s1004
      %s1006 = smul.f32 %s1002, %s1002
      %s1007 = ssub.f32 %s1005, %s1006
      %v1008 = vstv %s1002
      %v1009 = vsub.f32 %v976, %v1008
      %v1010 = vsub.f32 %v977, %v1008
      %s1011 = sadd.f32 %s1007, 1e-05
      %v1012 = vstv %s1011
      %v1013 = vrsqrt.pop %v1012
      %s1014 = vtos %v1013
      %v1015 = vstv %s1014
      %v1016 = vmul.f32 %v1009, %v1015
      %v1017 = vmul.f32 %v1010, %v1015
      %v1018 = vld [vmem:[%s5] sm:$0x1]
      %v1020 = vlaneseq
      %v1021 = vshrl.u32 %v1020, 7
      %v1022 = vsub.s32 0, %v1021
      %v1023 = vrot.slane %v1018, %v1022
      %v1025 = vmul.f32 %v1016, %v1023
      %v1026 = vmul.f32 %v1017, %v1023
      %v1027 = vld [vmem:[%s6] sm:$0x1]
      %v1029 = vlaneseq
      %v1030 = vshrl.u32 %v1029, 7
      %v1031 = vsub.s32 0, %v1030
      %v1032 = vrot.slane %v1027, %v1031
      %v1034 = vadd.f32 %v1025, %v1032
      %v1035 = vadd.f32 %v1026, %v1032
      %v1036 = vmax.f32 %v1034, 0.0
      %v1037 = vmax.f32 %v1035, 0.0
      %v1038 = vld [vmem:[%s7] sm:$0xff]
      %v1039 = vld [vmem:[%s7 + $0x8] sm:$0xff]
      %v1040 = vld [vmem:[%s7 + $0x10] sm:$0xff]
      %v1041 = vld [vmem:[%s7 + $0x18] sm:$0xff]
      %v1042 = vld [vmem:[%s7 + $0x20] sm:$0xff]
      %v1043 = vld [vmem:[%s7 + $0x28] sm:$0xff]
      %v1044 = vld [vmem:[%s7 + $0x30] sm:$0xff]
      %v1045 = vld [vmem:[%s7 + $0x38] sm:$0xff]
      %v1046 = vld [vmem:[%s8] sm:$0x1]
      %v1048 = vlaneseq
      %v1049 = vshrl.u32 %v1048, 7
      %v1050 = vsub.s32 0, %v1049
      %v1051 = vrot.slane %v1046, %v1050
      %1053 = vmatprep.subr.mxu0 0.0
      %1054 = vmatpush1.msra.mxu0 0.0
      %1055 = vmatprep.subr.mxu0 0.0
      %1056 = vmatpush1.msra.mxu0 0.0
      %1057 = vmatprep.subr.mxu0 0.0
      %1058 = vmatpush1.msra.mxu0 0.0
      %1059 = vmatprep.subr.mxu0 0.0
      %1060 = vmatpush1.msra.mxu0 0.0
      %1061 = vmatprep.subr.mxu0 0.0
      %1062 = vmatpush1.msra.mxu0 0.0
      %1063 = vmatprep.subr.mxu0 0.0
      %1064 = vmatpush1.msra.mxu0 0.0
      %1065 = vmatprep.subr.mxu0 0.0
      %1066 = vmatpush1.msra.mxu0 0.0
      %1067 = vmatprep.subr.mxu0 0.0
      %1068 = vmatpush1.msra.mxu0 0.0
      %1069 = vmatprep.subr.mxu0 0.0
      %1070 = vmatpush1.msra.mxu0 %v1045
      %1071 = vmatprep.subr.mxu0 0.0
      %1072 = vmatpush1.msra.mxu0 %v1044
      %1073 = vmatprep.subr.mxu0 0.0
      %1074 = vmatpush1.msra.mxu0 %v1043
      %1075 = vmatprep.subr.mxu0 0.0
      %1076 = vmatpush1.msra.mxu0 %v1042
      %1077 = vmatprep.subr.mxu0 0.0
      %1078 = vmatpush1.msra.mxu0 %v1041
      %1079 = vmatprep.subr.mxu0 0.0
      %1080 = vmatpush1.msra.mxu0 %v1040
      %1081 = vmatprep.subr.mxu0 0.0
      %1082 = vmatpush1.msra.mxu0 %v1039
      %1083 = vmatprep.subr.mxu0 0.0
      %1084 = vmatpush1.msra.mxu0 %v1038
      %1085 = vmatprep.subr.mxu0 0.0
      %1086 = vmatpush2.msra.mxu0 0.0
      %1087 = vmatprep.subr.mxu0 0.0
      %1088 = vmatpush2.msra.mxu0 0.0
      %1089 = vmatprep.subr.mxu0 0.0
      %1090 = vmatpush2.msra.mxu0 0.0
      %1091 = vmatprep.subr.mxu0 0.0
      %1092 = vmatpush2.msra.mxu0 0.0
      %1093 = vmatprep.subr.mxu0 0.0
      %1094 = vmatpush2.msra.mxu0 0.0
      %1095 = vmatprep.subr.mxu0 0.0
      %1096 = vmatpush2.msra.mxu0 0.0
      %1097 = vmatprep.subr.mxu0 0.0
      %1098 = vmatpush2.msra.mxu0 0.0
      %1099 = vmatprep.subr.mxu0 0.0
      %1100 = vmatpush2.msra.mxu0 0.0
      %1101 = vmatprep.subr.mxu0 0.0
      %1102 = vmatpush2.msra.mxu0 0.0
      %1103 = vmatprep.subr.mxu0 0.0
      %1104 = vmatpush2.msra.mxu0 0.0
      %1105 = vmatprep.subr.mxu0 0.0
      %1106 = vmatpush2.msra.mxu0 0.0
      %1107 = vmatprep.subr.mxu0 0.0
      %1108 = vmatpush2.msra.mxu0 0.0
      %1109 = vmatprep.subr.mxu0 0.0
      %1110 = vmatpush2.msra.mxu0 0.0
      %1111 = vmatprep.subr.mxu0 0.0
      %1112 = vmatpush2.msra.mxu0 0.0
      %1113 = vmatprep.subr.mxu0 0.0
      %1114 = vmatpush2.msra.mxu0 0.0
      %1115 = vmatprep.subr.mxu0 0.0
      %1116 = vmatpush2.msra.mxu0 0.0
      %1117 = vmatprep.mubr.f32.mxu0 0.0
      %1118 = vmatmul.mubr.f32.gmra.mxu0 %v363
      %v1119 = vpop.f32.mrf.mxu0
      %v1120 = vadd.f32 %v1051, %v1119
      %v1121 = vpop.f32.mrf.mxu0
      %1122 = vmatprep.mubr.f32.mxu0 0.0
      %1123 = vmatmul.mubr.f32.gmra.mxu0 %v365
      %v1124 = vpop.f32.mrf.mxu0
      %v1125 = vadd.f32 %v1051, %v1124
      %v1126 = vpop.f32.mrf.mxu0
      %1127 = vdwg.mxu0
      %v1128 = vadd.f32 %v1036, %v1120
      %v1129 = vadd.f32 %v1037, %v1125
      %1130 = vst [vmem:[%s332] sm:$0xff] %v1128
      %1131 = vst [vmem:[%s332 + $0x8] sm:$0xff] %v1129
      %p1132 = scmp.lt.s32.totalorder %s20, 1
      %s1133 = scalar_select %p1132, %s20, 1
      %s1134 = smul.addr %s1133, 2
      %s1135 = smul.addr %s1134, 8
      %s1136 = scalar_lea.vmem %s9, %s1135
      // Predicated region
      $region57: #{resblock_forward.1} parent=55 // pred_check
        %p1137 = pneg %p232
      $region58: #{resblock_forward.1} parent=55 // pred_check_branch
        %1139 = sbr.rel (%p1137) target = $region60
      $region59: #{resblock_forward.1} parent=55 // pred_region
        _
      $region60: #{resblock_forward.1} parent=55 // pred_fallthru
        _
    $region56: #{resblock_forward.1} parent=5 // pred_fallthru
      _
    %p1140 = scmp.le.s32.totalorder 2, %s15
    // Predicated region
    $region61: #{resblock_forward.1} parent=5 // pred_check
      %p1141 = pneg %p1140
    $region62: #{resblock_forward.1} parent=5 // pred_check_branch
      %1143 = sbr.rel (%p1141) target = $region64
    $region63: #{resblock_forward.1} parent=5 // pred_region
      %s1144 = ssub.s32 %s15, 2
      // Predicated region
      $region65: #{resblock_forward.1} parent=63 // pred_check
        %p1145 = pneg %p238
      $region66: #{resblock_forward.1} parent=63 // pred_check_branch
        %1147 = sbr.rel (%p1145) target = $region68
      $region67: #{resblock_forward.1} parent=63 // pred_region
        %p1148 = scmp.lt.s32.totalorder %s21, 1
        %s1149 = scalar_select %p1148, %s21, 1
        %s1150 = smul.addr %s1149, 2
        %s1151 = smul.addr %s1150, 8
        %s1152 = scalar_lea.vmem %s9, %s1151
      $region68: #{resblock_forward.1} parent=63 // pred_fallthru
        _
    $region64: #{resblock_forward.1} parent=5 // pred_fallthru
      _
  $region6: #{resblock_forward.1} parent=0 // loop_footer
    %s19 = sadd.s32 1, %s15
  $region7: #{resblock_forward.1} parent=0 // loop_footer_branch
    %14 = sbr.rel target = $region3
  $region8: #{resblock_forward.1} parent=0 // loop_exit
    _

</llo_original>
